<compile_context>
chip_gen: v7x
topology: tpu7x:2x2x1
jax: 0.10.0
libtpu: 0.0.40
codegen_flags: <defaults>
</compile_context>

<pallas_src>
import functools
import math

import jax
import jax.numpy as jnp
from jax import lax
from jax.experimental import pallas as pl
from jax.experimental.pallas import tpu as pltpu


# ----------------------------- config ---------------------------------------
class Cfg:
    vocab_size = 64
    hidden = 32
    num_layers = 2
    num_heads = 2
    head_dim = 16            # hidden // num_heads
    intermediate = 64
    max_pos = 16
    type_vocab = 2
    ln_eps = 1e-12
    num_classes_a = 3
    num_classes_b = 5
    classes_pad = 128        # lane-dense padded head / slab width


# Coalesced bias / LayerNorm slab layout: one (R, 128) f32 VMEM input, one row per vector.
ROW_EMB_LN_G = 0
ROW_EMB_LN_B = 1
ROW_HEAD_B = 2
ROW_LAYER0 = 3
LAYER_ROWS = 8
(OFF_BQKV, OFF_BO, OFF_LN1G, OFF_LN1B,
 OFF_B1, OFF_B2, OFF_LN2G, OFF_LN2B) = range(LAYER_ROWS)

_VMEM = pl.BlockSpec(memory_space=pltpu.MemorySpace.VMEM)


# ----------------------------- kernel ----------------------------------------
def _ln(x, g, b, eps):
    """LayerNorm over the last (lane) axis. x:(N,H), g/b:(1,H)."""
    mu = jnp.mean(x, axis=-1, keepdims=True)
    var = jnp.mean((x - mu) ** 2, axis=-1, keepdims=True)
    return (x - mu) * lax.rsqrt(var + eps) * g + b


def fused_forward_kernel(
    ids_ref, maskf_ref, wemb_ref, pemb_ref,
    wqkv_ref, wo_ref, w1_ref, w2_ref, wh_ref, vec_ref,
    out_ref,
    *, batch, seq, num_layers, num_heads, head_dim, intermediate, vocab, eps,
):
    B, S, nH, Dh = batch, seq, num_heads, head_dim
    BS = B * S
    H = nH * Dh

    # ---- in-kernel embedding lookup: one-hot (BS,V) @ word_emb (V,H) on the MXU ----
    ids = ids_ref[...]                                              # (BS, 1) int32
    onehot = (ids == lax.broadcasted_iota(jnp.int32, (BS, vocab), 1)).astype(jnp.float32)
    emb = jnp.dot(onehot, wemb_ref[...], preferred_element_type=jnp.float32)   # (BS, H)
    # positional + token-type(=0) embeddings, pre-summed at pack time, broadcast over batch
    emb = (emb.reshape(B, S, H) + pemb_ref[0:S, :][None, :, :]).reshape(BS, H)

    x = _ln(emb,
            vec_ref[ROW_EMB_LN_G:ROW_EMB_LN_G + 1, :H],
            vec_ref[ROW_EMB_LN_B:ROW_EMB_LN_B + 1, :H], eps)

    # ---- block-diagonal additive mask over the flattened (BS, BS) scores, built ONCE.
    #      Cross-batch / padded-key entries get -10000 -> exp underflows to exactly 0
    #      in f32, so the fused softmax matches the per-batch reference softmax. ----
    kvalid = maskf_ref[...]                                         # (1, BS)
    rb = jnp.floor(lax.broadcasted_iota(jnp.int32, (BS, BS), 0).astype(jnp.float32) * (1.0 / S))
    cb = jnp.floor(lax.broadcasted_iota(jnp.int32, (BS, BS), 1).astype(jnp.float32) * (1.0 / S))
    add_mask = jnp.where((rb == cb) & (kvalid > 0.5), 0.0, -10000.0)   # (BS, BS)

    for l in range(num_layers):                 # static unroll; weights VMEM-resident
        base = ROW_LAYER0 + l * LAYER_ROWS

        # ---- fused QKV: one (BS,H) x (H,3H) matmul; 1/sqrt(Dh) folded into Q at pack ----
        qkv = (jnp.dot(x, wqkv_ref[l], preferred_element_type=jnp.float32)
               + vec_ref[base + OFF_BQKV:base + OFF_BQKV + 1, :3 * H])    # (BS, 3H)

        ctxs = []
        for h in range(nH):                     # static sub-vreg lane slices per head
            qh = qkv[:, h * Dh:(h + 1) * Dh]
            kh = qkv[:, H + h * Dh:H + (h + 1) * Dh]
            vh = qkv[:, 2 * H + h * Dh:2 * H + (h + 1) * Dh]
            s = jnp.einsum('qd,kd->qk', qh, kh,
                           preferred_element_type=jnp.float32) + add_mask  # (BS, BS)
            m = jnp.max(s, axis=-1, keepdims=True)
            p = jnp.exp(s - m)
            p = p * pl.reciprocal(jnp.sum(p, axis=-1, keepdims=True), approx=True)
            ctxs.append(jnp.dot(p, vh, preferred_element_type=jnp.float32))  # (BS, Dh)

        ctx = jnp.concatenate(ctxs, axis=-1)                         # (BS, H), head-major lanes
        attn = (jnp.dot(ctx, wo_ref[l], preferred_element_type=jnp.float32)
                + vec_ref[base + OFF_BO:base + OFF_BO + 1, :H])
        x = _ln(x + attn,
                vec_ref[base + OFF_LN1G:base + OFF_LN1G + 1, :H],
                vec_ref[base + OFF_LN1B:base + OFF_LN1B + 1, :H], eps)

        # ---- feed-forward ----
        hdn = (jnp.dot(x, w1_ref[l], preferred_element_type=jnp.float32)
               + vec_ref[base + OFF_B1:base + OFF_B1 + 1, :intermediate])
        # TODO(synk): HF BERT uses exact (erf) GELU; tanh approximation used here (~1e-3 diff).
        hdn = jax.nn.gelu(hdn, approximate=True)
        ffn = (jnp.dot(hdn, w2_ref[l], preferred_element_type=jnp.float32)
               + vec_ref[base + OFF_B2:base + OFF_B2 + 1, :H])
        x = _ln(x + ffn,
                vec_ref[base + OFF_LN2G:base + OFF_LN2G + 1, :H],
                vec_ref[base + OFF_LN2B:base + OFF_LN2B + 1, :H], eps)

    # ---- fused, lane-dense classification heads on ALL rows (free at this size);
    #      the wrapper takes rows 0, S, 2S, ... (the CLS tokens). ----
    out_ref[...] = (jnp.dot(x, wh_ref[...], preferred_element_type=jnp.float32)
                    + vec_ref[ROW_HEAD_B:ROW_HEAD_B + 1, :])         # (BS, 128)


# --------------------------- pallas wrapper -----------------------------------
def fused_forward(packed, input_ids, attention_mask, cfg):
    B, S = input_ids.shape
    BS = B * S
    CP = packed['w_heads'].shape[1]

    # Only remaining plain-JAX prep: two O(100-byte) reshapes/casts of the int inputs.
    ids2 = input_ids.astype(jnp.int32).reshape(BS, 1)
    maskf = attention_mask.astype(jnp.float32).reshape(1, BS)

    kern = functools.partial(
        fused_forward_kernel,
        batch=B, seq=S,
        num_layers=cfg.num_layers, num_heads=cfg.num_heads,
        head_dim=cfg.head_dim, intermediate=cfg.intermediate,
        vocab=cfg.vocab_size, eps=cfg.ln_eps)

    args = (ids2, maskf,
            packed['word_emb'], packed['pos_type_emb'],
            packed['wqkv'], packed['wo'], packed['w1'], packed['w2'],
            packed['w_heads'], packed['vecs'])

    return pl.pallas_call(
        kern,
        out_shape=jax.ShapeDtypeStruct((BS, CP), jnp.float32),
        in_specs=[_VMEM] * len(args),
        out_specs=_VMEM,
    )(*args)


# ----------------------------- params ----------------------------------------
def init_params(key, cfg):
    """Natural (HF-BERT-like) per-layer parameter shapes."""
    def nrm(k, shape):
        return (0.02 * jax.random.normal(k, shape)).astype(jnp.float32)

    keys = iter(jax.random.split(key, 8 + cfg.num_layers * 8))
    p = {
        'word_emb': nrm(next(keys), (cfg.vocab_size, cfg.hidden)),
        'pos_emb': nrm(next(keys), (cfg.max_pos, cfg.hidden)),
        'type_emb': nrm(next(keys), (cfg.type_vocab, cfg.hidden)),
        'emb_ln_g': jnp.ones((cfg.hidden,), jnp.float32),
        'emb_ln_b': jnp.zeros((cfg.hidden,), jnp.float32),
        'wa': nrm(next(keys), (cfg.hidden, cfg.num_classes_a)),
        'ba': jnp.zeros((cfg.num_classes_a,), jnp.float32),
        'wb': nrm(next(keys), (cfg.hidden, cfg.num_classes_b)),
        'bb': jnp.zeros((cfg.num_classes_b,), jnp.float32),
        'layers': [],
    }
    H, I = cfg.hidden, cfg.intermediate
    for _ in range(cfg.num_layers):
        lp = {
            'wq': nrm(next(keys), (H, H)), 'bq': jnp.zeros((H,), jnp.float32),
            'wk': nrm(next(keys), (H, H)), 'bk': jnp.zeros((H,), jnp.float32),
            'wv': nrm(next(keys), (H, H)), 'bv': jnp.zeros((H,), jnp.float32),
            'wo': nrm(next(keys), (H, H)), 'bo': jnp.zeros((H,), jnp.float32),
            'ln1_g': jnp.ones((H,), jnp.float32),
            'ln1_b': jnp.zeros((H,), jnp.float32),
            'w1': nrm(next(keys), (H, I)), 'b1': jnp.zeros((I,), jnp.float32),
            'w2': nrm(next(keys), (I, H)), 'b2': jnp.zeros((H,), jnp.float32),
            'ln2_g': jnp.ones((H,), jnp.float32),
            'ln2_b': jnp.zeros((H,), jnp.float32),
        }
        p['layers'].append(lp)
    return p


def pack_params(p, cfg):
    """One-time repack into the kernel layout: fused QKV (scale folded into Q),
    layer-stacked dense weights, fused lane-dense heads, and one coalesced
    (R, 128) bias/LayerNorm slab."""
    L, H, I = cfg.num_layers, cfg.hidden, cfg.intermediate
    CP = cfg.classes_pad
    scale = 1.0 / math.sqrt(cfg.head_dim)

    def stack(name):
        return jnp.stack([lp[name] for lp in p['layers']])

    # Fused QKV weight (L, H, 3H); 1/sqrt(head_dim) folded into the Q third.
    wqkv = jnp.concatenate([stack('wq') * scale, stack('wk'), stack('wv')], axis=-1)
    bqkv = jnp.concatenate([stack('bq') * scale, stack('bk'), stack('bv')], axis=-1)  # (L, 3H)

    # Fused lane-dense head weight: cols [0:3] = task A, [3:8] = task B, rest zero.
    na, nb = cfg.num_classes_a, cfg.num_classes_b
    wh = jnp.zeros((H, CP), jnp.float32)
    wh = wh.at[:, :na].set(p['wa']).at[:, na:na + nb].set(p['wb'])

    # Coalesced bias / LayerNorm slab.
    rows = ROW_LAYER0 + LAYER_ROWS * L
    R = ((rows + 7) // 8) * 8
    vecs = jnp.zeros((R, CP), jnp.float32)
    vecs = vecs.at[ROW_EMB_LN_G, :H].set(p['emb_ln_g'])
    vecs = vecs.at[ROW_EMB_LN_B, :H].set(p['emb_ln_b'])
    vecs = vecs.at[ROW_HEAD_B, :na].set(p['ba'])
    vecs = vecs.at[ROW_HEAD_B, na:na + nb].set(p['bb'])
    for l, lp in enumerate(p['layers']):
        base = ROW_LAYER0 + l * LAYER_ROWS
        vecs = vecs.at[base + OFF_BQKV, :3 * H].set(bqkv[l])
        vecs = vecs.at[base + OFF_BO, :H].set(lp['bo'])
        vecs = vecs.at[base + OFF_LN1G, :H].set(lp['ln1_g'])
        vecs = vecs.at[base + OFF_LN1B, :H].set(lp['ln1_b'])
        vecs = vecs.at[base + OFF_B1, :I].set(lp['b1'])
        vecs = vecs.at[base + OFF_B2, :H].set(lp['b2'])
        vecs = vecs.at[base + OFF_LN2G, :H].set(lp['ln2_g'])
        vecs = vecs.at[base + OFF_LN2B, :H].set(lp['ln2_b'])

    return {
        'word_emb': p['word_emb'],
        # token_type_ids hard-coded to 0 (reference call passes ids + mask only).
        'pos_type_emb': p['pos_emb'] + p['type_emb'][0][None, :],
        'wqkv': wqkv,
        'wo': stack('wo'),
        'w1': stack('w1'),
        'w2': stack('w2'),
        'w_heads': wh,
        'vecs': vecs,
    }


# ----------------------------- model ------------------------------------------
def multi_task_forward(packed, input_ids, attention_mask, cfg):
    S = input_ids.shape[1]
    full = fused_forward(packed, input_ids, attention_mask, cfg)      # (B*S, 128)
    cls = full[::S]                                                   # rows 0, S, ... = CLS tokens
    na, nb = cfg.num_classes_a, cfg.num_classes_b
    return cls[:, :na], cls[:, na:na + nb]


# ----------------------------- main --------------------------------------------
if __name__ == "__main__":
    cfg = Cfg()
    B, S = 2, 8

    key = jax.random.PRNGKey(0)
    k_param, k_ids = jax.random.split(key)
    params = init_params(k_param, cfg)
    packed = pack_params(params, cfg)        # one-time repack to kernel layout

    input_ids = jax.random.randint(k_ids, (B, S), 0, cfg.vocab_size,
                                   dtype=jnp.int32)
    # sequence lengths [8, 6] -> second example has 2 padding tokens masked out
    lengths = jnp.array([8, 6], dtype=jnp.int32)
    attention_mask = (jnp.arange(S)[None, :] < lengths[:, None]).astype(jnp.int32)

    fwd = jax.jit(functools.partial(multi_task_forward, cfg=cfg))
    logits_a, logits_b = fwd(packed, input_ids, attention_mask)
    jax.block_until_ready((logits_a, logits_b))

    assert logits_a.shape == (B, cfg.num_classes_a)
    assert logits_b.shape == (B, cfg.num_classes_b)
    print("KERNEL_OK")
</pallas_src>

<mosaic_0001>
module attributes {stable_mosaic.version = 11 : i64} {
  func.func @fused_forward_kernel(%arg0: memref<16x1xi32, #tpu.memory_space<vmem>>, %arg1: memref<1x16xf32, #tpu.memory_space<vmem>>, %arg2: memref<64x32xf32, #tpu.memory_space<vmem>>, %arg3: memref<16x32xf32, #tpu.memory_space<vmem>>, %arg4: memref<2x32x96xf32, #tpu.memory_space<vmem>>, %arg5: memref<2x32x32xf32, #tpu.memory_space<vmem>>, %arg6: memref<2x32x64xf32, #tpu.memory_space<vmem>>, %arg7: memref<2x64x32xf32, #tpu.memory_space<vmem>>, %arg8: memref<32x128xf32, #tpu.memory_space<vmem>>, %arg9: memref<24x128xf32, #tpu.memory_space<vmem>>, %arg10: memref<16x128xf32, #tpu.memory_space<vmem>>) attributes {dimension_semantics = [], scalar_prefetch = 0 : i64, scratch_operands = 0 : i64, tpu.core_type = #tpu.core_type<tc>} {
    %c0 = arith.constant 0 : index
    %c0_0 = arith.constant 0 : index
    %0 = vector.load %arg0[%c0, %c0_0] : memref<16x1xi32, #tpu.memory_space<vmem>>, vector<16x1xi32>
    %1 = tpu.iota {dimensions = array<i32: 1>} : vector<16x64xi32>
    %2 = vector.broadcast %0 : vector<16x1xi32> to vector<16x64xi32>
    %3 = arith.cmpi eq, %2, %1 : vector<16x64xi32>
    %4 = arith.extui %3 : vector<16x64xi1> to vector<16x64xi32>
    %5 = arith.sitofp %4 : vector<16x64xi32> to vector<16x64xf32>
    %c0_1 = arith.constant 0 : index
    %c0_2 = arith.constant 0 : index
    %6 = vector.load %arg2[%c0_1, %c0_2] : memref<64x32xf32, #tpu.memory_space<vmem>>, vector<64x32xf32>
    %cst = arith.constant dense<0.000000e+00> : vector<16x32xf32>
    %7 = tpu.matmul %5, %6, %cst {dimension_numbers = #tpu.dot_dimension_numbers<[1], [0], [0], [1], [0, 0, 1, 1], [], []>} : vector<16x64xf32>, vector<64x32xf32>, vector<16x32xf32> -> vector<16x32xf32>
    %8 = vector.shape_cast %7 : vector<16x32xf32> to vector<2x8x32xf32>
    %c0_3 = arith.constant 0 : index
    %c0_4 = arith.constant 0 : index
    %9 = vector.load %arg3[%c0_3, %c0_4] : memref<16x32xf32, #tpu.memory_space<vmem>>, vector<8x32xf32>
    %10 = vector.shape_cast %9 : vector<8x32xf32> to vector<1x8x32xf32>
    %11 = vector.broadcast %10 : vector<1x8x32xf32> to vector<2x8x32xf32>
    %12 = arith.addf %8, %11 : vector<2x8x32xf32>
    %13 = vector.shape_cast %12 : vector<2x8x32xf32> to vector<16x32xf32>
    %c0_5 = arith.constant 0 : index
    %c0_6 = arith.constant 0 : index
    %14 = vector.load %arg9[%c0_5, %c0_6] : memref<24x128xf32, #tpu.memory_space<vmem>>, vector<1x32xf32>
    %c1 = arith.constant 1 : index
    %c0_7 = arith.constant 0 : index
    %15 = vector.load %arg9[%c1, %c0_7] : memref<24x128xf32, #tpu.memory_space<vmem>>, vector<1x32xf32>
    %cst_8 = arith.constant dense<0.000000e+00> : vector<16xf32>
    %16 = vector.multi_reduction <add>, %13, %cst_8 [1] : vector<16x32xf32> to vector<16xf32>
    %17 = vector.shape_cast %16 : vector<16xf32> to vector<16x1xf32>
    %cst_9 = arith.constant 3.200000e+01 : f32
    %18 = vector.broadcast %cst_9 : f32 to vector<16x1xf32>
    %19 = arith.divf %17, %18 : vector<16x1xf32>
    %20 = vector.broadcast %19 : vector<16x1xf32> to vector<16x32xf32>
    %21 = arith.subf %13, %20 : vector<16x32xf32>
    %22 = arith.mulf %21, %21 : vector<16x32xf32>
    %cst_10 = arith.constant dense<0.000000e+00> : vector<16xf32>
    %23 = vector.multi_reduction <add>, %22, %cst_10 [1] : vector<16x32xf32> to vector<16xf32>
    %24 = vector.shape_cast %23 : vector<16xf32> to vector<16x1xf32>
    %cst_11 = arith.constant 3.200000e+01 : f32
    %25 = vector.broadcast %cst_11 : f32 to vector<16x1xf32>
    %26 = arith.divf %24, %25 : vector<16x1xf32>
    %27 = vector.broadcast %19 : vector<16x1xf32> to vector<16x32xf32>
    %28 = arith.subf %13, %27 : vector<16x32xf32>
    %cst_12 = arith.constant 9.99999996E-13 : f32
    %29 = vector.broadcast %cst_12 : f32 to vector<16x1xf32>
    %30 = arith.addf %26, %29 : vector<16x1xf32>
    %31 = math.rsqrt %30 : vector<16x1xf32>
    %32 = vector.broadcast %31 : vector<16x1xf32> to vector<16x32xf32>
    %33 = arith.mulf %28, %32 : vector<16x32xf32>
    %34 = vector.broadcast %14 : vector<1x32xf32> to vector<16x32xf32>
    %35 = arith.mulf %33, %34 : vector<16x32xf32>
    %36 = vector.broadcast %15 : vector<1x32xf32> to vector<16x32xf32>
    %37 = arith.addf %35, %36 : vector<16x32xf32>
    %c0_13 = arith.constant 0 : index
    %c0_14 = arith.constant 0 : index
    %38 = vector.load %arg1[%c0_13, %c0_14] : memref<1x16xf32, #tpu.memory_space<vmem>>, vector<1x16xf32>
    %39 = tpu.iota {dimensions = array<i32: 0>} : vector<16x16xi32>
    %40 = arith.sitofp %39 : vector<16x16xi32> to vector<16x16xf32>
    %cst_15 = arith.constant 1.250000e-01 : f32
    %41 = vector.broadcast %cst_15 : f32 to vector<16x16xf32>
    %42 = arith.mulf %40, %41 : vector<16x16xf32>
    %43 = math.floor %42 : vector<16x16xf32>
    %44 = tpu.iota {dimensions = array<i32: 1>} : vector<16x16xi32>
    %45 = arith.sitofp %44 : vector<16x16xi32> to vector<16x16xf32>
    %cst_16 = arith.constant 1.250000e-01 : f32
    %46 = vector.broadcast %cst_16 : f32 to vector<16x16xf32>
    %47 = arith.mulf %45, %46 : vector<16x16xf32>
    %48 = math.floor %47 : vector<16x16xf32>
    %49 = arith.cmpf oeq, %43, %48 : vector<16x16xf32>
    %cst_17 = arith.constant 5.000000e-01 : f32
    %50 = vector.broadcast %cst_17 : f32 to vector<1x16xf32>
    %51 = arith.cmpf ogt, %38, %50 : vector<1x16xf32>
    %52 = vector.broadcast %51 : vector<1x16xi1> to vector<16x16xi1>
    %53 = arith.andi %49, %52 : vector<16x16xi1>
    %cst_18 = arith.constant 0.000000e+00 : f32
    %cst_19 = arith.constant -1.000000e+04 : f32
    %54 = vector.broadcast %cst_18 : f32 to vector<16x16xf32>
    %55 = vector.broadcast %cst_19 : f32 to vector<16x16xf32>
    %56 = arith.select %53, %54, %55 : vector<16x16xi1>, vector<16x16xf32>
    %c0_20 = arith.constant 0 : index
    %c0_21 = arith.constant 0 : index
    %c0_22 = arith.constant 0 : index
    %57 = vector.load %arg4[%c0_20, %c0_21, %c0_22] : memref<2x32x96xf32, #tpu.memory_space<vmem>>, vector<1x32x96xf32>
    %58 = vector.shape_cast %57 : vector<1x32x96xf32> to vector<32x96xf32>
    %cst_23 = arith.constant dense<0.000000e+00> : vector<16x96xf32>
    %59 = tpu.matmul %37, %58, %cst_23 {dimension_numbers = #tpu.dot_dimension_numbers<[1], [0], [0], [1], [0, 0, 1, 1], [], []>} : vector<16x32xf32>, vector<32x96xf32>, vector<16x96xf32> -> vector<16x96xf32>
    %c3 = arith.constant 3 : index
    %c0_24 = arith.constant 0 : index
    %60 = vector.load %arg9[%c3, %c0_24] : memref<24x128xf32, #tpu.memory_space<vmem>>, vector<1x96xf32>
    %61 = vector.broadcast %60 : vector<1x96xf32> to vector<16x96xf32>
    %62 = arith.addf %59, %61 : vector<16x96xf32>
    %63 = vector.extract_strided_slice %62 {offsets = [0, 0], sizes = [16, 16], strides = [1, 1]} : vector<16x96xf32> to vector<16x16xf32>
    %64 = vector.extract_strided_slice %62 {offsets = [0, 32], sizes = [16, 16], strides = [1, 1]} : vector<16x96xf32> to vector<16x16xf32>
    %65 = vector.extract_strided_slice %62 {offsets = [0, 64], sizes = [16, 16], strides = [1, 1]} : vector<16x96xf32> to vector<16x16xf32>
    "tpu.trace_start"() <{level = 10 : i32, message = "qd,kd->qk"}> : () -> ()
    %cst_25 = arith.constant dense<0.000000e+00> : vector<16x16xf32>
    %66 = tpu.matmul %63, %64, %cst_25 {dimension_numbers = #tpu.dot_dimension_numbers<[1], [1], [0], [0], [0, 0, 1, 0], [], []>} : vector<16x16xf32>, vector<16x16xf32>, vector<16x16xf32> -> vector<16x16xf32>
    "tpu.trace_stop"() : () -> ()
    %67 = arith.addf %66, %56 : vector<16x16xf32>
    %cst_26 = arith.constant dense<0xFF800000> : vector<16xf32>
    %68 = vector.multi_reduction <maximumf>, %67, %cst_26 [1] : vector<16x16xf32> to vector<16xf32>
    %69 = vector.shape_cast %68 : vector<16xf32> to vector<16x1xf32>
    %70 = vector.broadcast %69 : vector<16x1xf32> to vector<16x16xf32>
    %71 = arith.subf %67, %70 : vector<16x16xf32>
    %72 = math.exp %71 : vector<16x16xf32>
    %cst_27 = arith.constant dense<0.000000e+00> : vector<16xf32>
    %73 = vector.multi_reduction <add>, %72, %cst_27 [1] : vector<16x16xf32> to vector<16xf32>
    %74 = vector.shape_cast %73 : vector<16xf32> to vector<16x1xf32>
    %75 = tpu.reciprocal %74 {approx = true} : vector<16x1xf32> -> vector<16x1xf32>
    %76 = vector.broadcast %75 : vector<16x1xf32> to vector<16x16xf32>
    %77 = arith.mulf %72, %76 : vector<16x16xf32>
    %cst_28 = arith.constant dense<0.000000e+00> : vector<16x16xf32>
    %78 = tpu.matmul %77, %65, %cst_28 {dimension_numbers = #tpu.dot_dimension_numbers<[1], [0], [0], [1], [0, 0, 1, 1], [], []>} : vector<16x16xf32>, vector<16x16xf32>, vector<16x16xf32> -> vector<16x16xf32>
    %79 = vector.extract_strided_slice %62 {offsets = [0, 16], sizes = [16, 16], strides = [1, 1]} : vector<16x96xf32> to vector<16x16xf32>
    %80 = vector.extract_strided_slice %62 {offsets = [0, 48], sizes = [16, 16], strides = [1, 1]} : vector<16x96xf32> to vector<16x16xf32>
    %81 = vector.extract_strided_slice %62 {offsets = [0, 80], sizes = [16, 16], strides = [1, 1]} : vector<16x96xf32> to vector<16x16xf32>
    "tpu.trace_start"() <{level = 10 : i32, message = "qd,kd->qk"}> : () -> ()
    %cst_29 = arith.constant dense<0.000000e+00> : vector<16x16xf32>
    %82 = tpu.matmul %79, %80, %cst_29 {dimension_numbers = #tpu.dot_dimension_numbers<[1], [1], [0], [0], [0, 0, 1, 0], [], []>} : vector<16x16xf32>, vector<16x16xf32>, vector<16x16xf32> -> vector<16x16xf32>
    "tpu.trace_stop"() : () -> ()
    %83 = arith.addf %82, %56 : vector<16x16xf32>
    %cst_30 = arith.constant dense<0xFF800000> : vector<16xf32>
    %84 = vector.multi_reduction <maximumf>, %83, %cst_30 [1] : vector<16x16xf32> to vector<16xf32>
    %85 = vector.shape_cast %84 : vector<16xf32> to vector<16x1xf32>
    %86 = vector.broadcast %85 : vector<16x1xf32> to vector<16x16xf32>
    %87 = arith.subf %83, %86 : vector<16x16xf32>
    %88 = math.exp %87 : vector<16x16xf32>
    %cst_31 = arith.constant dense<0.000000e+00> : vector<16xf32>
    %89 = vector.multi_reduction <add>, %88, %cst_31 [1] : vector<16x16xf32> to vector<16xf32>
    %90 = vector.shape_cast %89 : vector<16xf32> to vector<16x1xf32>
    %91 = tpu.reciprocal %90 {approx = true} : vector<16x1xf32> -> vector<16x1xf32>
    %92 = vector.broadcast %91 : vector<16x1xf32> to vector<16x16xf32>
    %93 = arith.mulf %88, %92 : vector<16x16xf32>
    %cst_32 = arith.constant dense<0.000000e+00> : vector<16x16xf32>
    %94 = tpu.matmul %93, %81, %cst_32 {dimension_numbers = #tpu.dot_dimension_numbers<[1], [0], [0], [1], [0, 0, 1, 1], [], []>} : vector<16x16xf32>, vector<16x16xf32>, vector<16x16xf32> -> vector<16x16xf32>
    %95 = tpu.concatenate %78, %94 in 1 : vector<16x16xf32>, vector<16x16xf32> -> vector<16x32xf32>
    %c0_33 = arith.constant 0 : index
    %c0_34 = arith.constant 0 : index
    %c0_35 = arith.constant 0 : index
    %96 = vector.load %arg5[%c0_33, %c0_34, %c0_35] : memref<2x32x32xf32, #tpu.memory_space<vmem>>, vector<1x32x32xf32>
    %97 = vector.shape_cast %96 : vector<1x32x32xf32> to vector<32x32xf32>
    %cst_36 = arith.constant dense<0.000000e+00> : vector<16x32xf32>
    %98 = tpu.matmul %95, %97, %cst_36 {dimension_numbers = #tpu.dot_dimension_numbers<[1], [0], [0], [1], [0, 0, 1, 1], [], []>} : vector<16x32xf32>, vector<32x32xf32>, vector<16x32xf32> -> vector<16x32xf32>
    %c4 = arith.constant 4 : index
    %c0_37 = arith.constant 0 : index
    %99 = vector.load %arg9[%c4, %c0_37] : memref<24x128xf32, #tpu.memory_space<vmem>>, vector<1x32xf32>
    %100 = vector.broadcast %99 : vector<1x32xf32> to vector<16x32xf32>
    %101 = arith.addf %98, %100 : vector<16x32xf32>
    %102 = arith.addf %37, %101 : vector<16x32xf32>
    %c5 = arith.constant 5 : index
    %c0_38 = arith.constant 0 : index
    %103 = vector.load %arg9[%c5, %c0_38] : memref<24x128xf32, #tpu.memory_space<vmem>>, vector<1x32xf32>
    %c6 = arith.constant 6 : index
    %c0_39 = arith.constant 0 : index
    %104 = vector.load %arg9[%c6, %c0_39] : memref<24x128xf32, #tpu.memory_space<vmem>>, vector<1x32xf32>
    %cst_40 = arith.constant dense<0.000000e+00> : vector<16xf32>
    %105 = vector.multi_reduction <add>, %102, %cst_40 [1] : vector<16x32xf32> to vector<16xf32>
    %106 = vector.shape_cast %105 : vector<16xf32> to vector<16x1xf32>
    %cst_41 = arith.constant 3.200000e+01 : f32
    %107 = vector.broadcast %cst_41 : f32 to vector<16x1xf32>
    %108 = arith.divf %106, %107 : vector<16x1xf32>
    %109 = vector.broadcast %108 : vector<16x1xf32> to vector<16x32xf32>
    %110 = arith.subf %102, %109 : vector<16x32xf32>
    %111 = arith.mulf %110, %110 : vector<16x32xf32>
    %cst_42 = arith.constant dense<0.000000e+00> : vector<16xf32>
    %112 = vector.multi_reduction <add>, %111, %cst_42 [1] : vector<16x32xf32> to vector<16xf32>
    %113 = vector.shape_cast %112 : vector<16xf32> to vector<16x1xf32>
    %cst_43 = arith.constant 3.200000e+01 : f32
    %114 = vector.broadcast %cst_43 : f32 to vector<16x1xf32>
    %115 = arith.divf %113, %114 : vector<16x1xf32>
    %116 = vector.broadcast %108 : vector<16x1xf32> to vector<16x32xf32>
    %117 = arith.subf %102, %116 : vector<16x32xf32>
    %cst_44 = arith.constant 9.99999996E-13 : f32
    %118 = vector.broadcast %cst_44 : f32 to vector<16x1xf32>
    %119 = arith.addf %115, %118 : vector<16x1xf32>
    %120 = math.rsqrt %119 : vector<16x1xf32>
    %121 = vector.broadcast %120 : vector<16x1xf32> to vector<16x32xf32>
    %122 = arith.mulf %117, %121 : vector<16x32xf32>
    %123 = vector.broadcast %103 : vector<1x32xf32> to vector<16x32xf32>
    %124 = arith.mulf %122, %123 : vector<16x32xf32>
    %125 = vector.broadcast %104 : vector<1x32xf32> to vector<16x32xf32>
    %126 = arith.addf %124, %125 : vector<16x32xf32>
    %c0_45 = arith.constant 0 : index
    %c0_46 = arith.constant 0 : index
    %c0_47 = arith.constant 0 : index
    %127 = vector.load %arg6[%c0_45, %c0_46, %c0_47] : memref<2x32x64xf32, #tpu.memory_space<vmem>>, vector<1x32x64xf32>
    %128 = vector.shape_cast %127 : vector<1x32x64xf32> to vector<32x64xf32>
    %cst_48 = arith.constant dense<0.000000e+00> : vector<16x64xf32>
    %129 = tpu.matmul %126, %128, %cst_48 {dimension_numbers = #tpu.dot_dimension_numbers<[1], [0], [0], [1], [0, 0, 1, 1], [], []>} : vector<16x32xf32>, vector<32x64xf32>, vector<16x64xf32> -> vector<16x64xf32>
    %c7 = arith.constant 7 : index
    %c0_49 = arith.constant 0 : index
    %130 = vector.load %arg9[%c7, %c0_49] : memref<24x128xf32, #tpu.memory_space<vmem>>, vector<1x64xf32>
    %131 = vector.broadcast %130 : vector<1x64xf32> to vector<16x64xf32>
    %132 = arith.addf %129, %131 : vector<16x64xf32>
    %133 = arith.mulf %132, %132 : vector<16x64xf32>
    %134 = arith.mulf %132, %133 : vector<16x64xf32>
    %cst_50 = arith.constant 4.471500e-02 : f32
    %135 = vector.broadcast %cst_50 : f32 to vector<16x64xf32>
    %136 = arith.mulf %135, %134 : vector<16x64xf32>
    %137 = arith.addf %132, %136 : vector<16x64xf32>
    %cst_51 = arith.constant 0.797884583 : f32
    %138 = vector.broadcast %cst_51 : f32 to vector<16x64xf32>
    %139 = arith.mulf %138, %137 : vector<16x64xf32>
    %140 = math.tanh %139 : vector<16x64xf32>
    %cst_52 = arith.constant 1.000000e+00 : f32
    %141 = vector.broadcast %cst_52 : f32 to vector<16x64xf32>
    %142 = arith.addf %141, %140 : vector<16x64xf32>
    %cst_53 = arith.constant 5.000000e-01 : f32
    %143 = vector.broadcast %cst_53 : f32 to vector<16x64xf32>
    %144 = arith.mulf %143, %142 : vector<16x64xf32>
    %145 = arith.mulf %132, %144 : vector<16x64xf32>
    %c0_54 = arith.constant 0 : index
    %c0_55 = arith.constant 0 : index
    %c0_56 = arith.constant 0 : index
    %146 = vector.load %arg7[%c0_54, %c0_55, %c0_56] : memref<2x64x32xf32, #tpu.memory_space<vmem>>, vector<1x64x32xf32>
    %147 = vector.shape_cast %146 : vector<1x64x32xf32> to vector<64x32xf32>
    %cst_57 = arith.constant dense<0.000000e+00> : vector<16x32xf32>
    %148 = tpu.matmul %145, %147, %cst_57 {dimension_numbers = #tpu.dot_dimension_numbers<[1], [0], [0], [1], [0, 0, 1, 1], [], []>} : vector<16x64xf32>, vector<64x32xf32>, vector<16x32xf32> -> vector<16x32xf32>
    %c8 = arith.constant 8 : index
    %c0_58 = arith.constant 0 : index
    %149 = vector.load %arg9[%c8, %c0_58] : memref<24x128xf32, #tpu.memory_space<vmem>>, vector<1x32xf32>
    %150 = vector.broadcast %149 : vector<1x32xf32> to vector<16x32xf32>
    %151 = arith.addf %148, %150 : vector<16x32xf32>
    %152 = arith.addf %126, %151 : vector<16x32xf32>
    %c9 = arith.constant 9 : index
    %c0_59 = arith.constant 0 : index
    %153 = vector.load %arg9[%c9, %c0_59] : memref<24x128xf32, #tpu.memory_space<vmem>>, vector<1x32xf32>
    %c10 = arith.constant 10 : index
    %c0_60 = arith.constant 0 : index
    %154 = vector.load %arg9[%c10, %c0_60] : memref<24x128xf32, #tpu.memory_space<vmem>>, vector<1x32xf32>
    %cst_61 = arith.constant dense<0.000000e+00> : vector<16xf32>
    %155 = vector.multi_reduction <add>, %152, %cst_61 [1] : vector<16x32xf32> to vector<16xf32>
    %156 = vector.shape_cast %155 : vector<16xf32> to vector<16x1xf32>
    %cst_62 = arith.constant 3.200000e+01 : f32
    %157 = vector.broadcast %cst_62 : f32 to vector<16x1xf32>
    %158 = arith.divf %156, %157 : vector<16x1xf32>
    %159 = vector.broadcast %158 : vector<16x1xf32> to vector<16x32xf32>
    %160 = arith.subf %152, %159 : vector<16x32xf32>
    %161 = arith.mulf %160, %160 : vector<16x32xf32>
    %cst_63 = arith.constant dense<0.000000e+00> : vector<16xf32>
    %162 = vector.multi_reduction <add>, %161, %cst_63 [1] : vector<16x32xf32> to vector<16xf32>
    %163 = vector.shape_cast %162 : vector<16xf32> to vector<16x1xf32>
    %cst_64 = arith.constant 3.200000e+01 : f32
    %164 = vector.broadcast %cst_64 : f32 to vector<16x1xf32>
    %165 = arith.divf %163, %164 : vector<16x1xf32>
    %166 = vector.broadcast %158 : vector<16x1xf32> to vector<16x32xf32>
    %167 = arith.subf %152, %166 : vector<16x32xf32>
    %cst_65 = arith.constant 9.99999996E-13 : f32
    %168 = vector.broadcast %cst_65 : f32 to vector<16x1xf32>
    %169 = arith.addf %165, %168 : vector<16x1xf32>
    %170 = math.rsqrt %169 : vector<16x1xf32>
    %171 = vector.broadcast %170 : vector<16x1xf32> to vector<16x32xf32>
    %172 = arith.mulf %167, %171 : vector<16x32xf32>
    %173 = vector.broadcast %153 : vector<1x32xf32> to vector<16x32xf32>
    %174 = arith.mulf %172, %173 : vector<16x32xf32>
    %175 = vector.broadcast %154 : vector<1x32xf32> to vector<16x32xf32>
    %176 = arith.addf %174, %175 : vector<16x32xf32>
    %c1_66 = arith.constant 1 : index
    %c0_67 = arith.constant 0 : index
    %c0_68 = arith.constant 0 : index
    %177 = vector.load %arg4[%c1_66, %c0_67, %c0_68] : memref<2x32x96xf32, #tpu.memory_space<vmem>>, vector<1x32x96xf32>
    %178 = vector.shape_cast %177 : vector<1x32x96xf32> to vector<32x96xf32>
    %cst_69 = arith.constant dense<0.000000e+00> : vector<16x96xf32>
    %179 = tpu.matmul %176, %178, %cst_69 {dimension_numbers = #tpu.dot_dimension_numbers<[1], [0], [0], [1], [0, 0, 1, 1], [], []>} : vector<16x32xf32>, vector<32x96xf32>, vector<16x96xf32> -> vector<16x96xf32>
    %c11 = arith.constant 11 : index
    %c0_70 = arith.constant 0 : index
    %180 = vector.load %arg9[%c11, %c0_70] : memref<24x128xf32, #tpu.memory_space<vmem>>, vector<1x96xf32>
    %181 = vector.broadcast %180 : vector<1x96xf32> to vector<16x96xf32>
    %182 = arith.addf %179, %181 : vector<16x96xf32>
    %183 = vector.extract_strided_slice %182 {offsets = [0, 0], sizes = [16, 16], strides = [1, 1]} : vector<16x96xf32> to vector<16x16xf32>
    %184 = vector.extract_strided_slice %182 {offsets = [0, 32], sizes = [16, 16], strides = [1, 1]} : vector<16x96xf32> to vector<16x16xf32>
    %185 = vector.extract_strided_slice %182 {offsets = [0, 64], sizes = [16, 16], strides = [1, 1]} : vector<16x96xf32> to vector<16x16xf32>
    "tpu.trace_start"() <{level = 10 : i32, message = "qd,kd->qk"}> : () -> ()
    %cst_71 = arith.constant dense<0.000000e+00> : vector<16x16xf32>
    %186 = tpu.matmul %183, %184, %cst_71 {dimension_numbers = #tpu.dot_dimension_numbers<[1], [1], [0], [0], [0, 0, 1, 0], [], []>} : vector<16x16xf32>, vector<16x16xf32>, vector<16x16xf32> -> vector<16x16xf32>
    "tpu.trace_stop"() : () -> ()
    %187 = arith.addf %186, %56 : vector<16x16xf32>
    %cst_72 = arith.constant dense<0xFF800000> : vector<16xf32>
    %188 = vector.multi_reduction <maximumf>, %187, %cst_72 [1] : vector<16x16xf32> to vector<16xf32>
    %189 = vector.shape_cast %188 : vector<16xf32> to vector<16x1xf32>
    %190 = vector.broadcast %189 : vector<16x1xf32> to vector<16x16xf32>
    %191 = arith.subf %187, %190 : vector<16x16xf32>
    %192 = math.exp %191 : vector<16x16xf32>
    %cst_73 = arith.constant dense<0.000000e+00> : vector<16xf32>
    %193 = vector.multi_reduction <add>, %192, %cst_73 [1] : vector<16x16xf32> to vector<16xf32>
    %194 = vector.shape_cast %193 : vector<16xf32> to vector<16x1xf32>
    %195 = tpu.reciprocal %194 {approx = true} : vector<16x1xf32> -> vector<16x1xf32>
    %196 = vector.broadcast %195 : vector<16x1xf32> to vector<16x16xf32>
    %197 = arith.mulf %192, %196 : vector<16x16xf32>
    %cst_74 = arith.constant dense<0.000000e+00> : vector<16x16xf32>
    %198 = tpu.matmul %197, %185, %cst_74 {dimension_numbers = #tpu.dot_dimension_numbers<[1], [0], [0], [1], [0, 0, 1, 1], [], []>} : vector<16x16xf32>, vector<16x16xf32>, vector<16x16xf32> -> vector<16x16xf32>
    %199 = vector.extract_strided_slice %182 {offsets = [0, 16], sizes = [16, 16], strides = [1, 1]} : vector<16x96xf32> to vector<16x16xf32>
    %200 = vector.extract_strided_slice %182 {offsets = [0, 48], sizes = [16, 16], strides = [1, 1]} : vector<16x96xf32> to vector<16x16xf32>
    %201 = vector.extract_strided_slice %182 {offsets = [0, 80], sizes = [16, 16], strides = [1, 1]} : vector<16x96xf32> to vector<16x16xf32>
    "tpu.trace_start"() <{level = 10 : i32, message = "qd,kd->qk"}> : () -> ()
    %cst_75 = arith.constant dense<0.000000e+00> : vector<16x16xf32>
    %202 = tpu.matmul %199, %200, %cst_75 {dimension_numbers = #tpu.dot_dimension_numbers<[1], [1], [0], [0], [0, 0, 1, 0], [], []>} : vector<16x16xf32>, vector<16x16xf32>, vector<16x16xf32> -> vector<16x16xf32>
    "tpu.trace_stop"() : () -> ()
    %203 = arith.addf %202, %56 : vector<16x16xf32>
    %cst_76 = arith.constant dense<0xFF800000> : vector<16xf32>
    %204 = vector.multi_reduction <maximumf>, %203, %cst_76 [1] : vector<16x16xf32> to vector<16xf32>
    %205 = vector.shape_cast %204 : vector<16xf32> to vector<16x1xf32>
    %206 = vector.broadcast %205 : vector<16x1xf32> to vector<16x16xf32>
    %207 = arith.subf %203, %206 : vector<16x16xf32>
    %208 = math.exp %207 : vector<16x16xf32>
    %cst_77 = arith.constant dense<0.000000e+00> : vector<16xf32>
    %209 = vector.multi_reduction <add>, %208, %cst_77 [1] : vector<16x16xf32> to vector<16xf32>
    %210 = vector.shape_cast %209 : vector<16xf32> to vector<16x1xf32>
    %211 = tpu.reciprocal %210 {approx = true} : vector<16x1xf32> -> vector<16x1xf32>
    %212 = vector.broadcast %211 : vector<16x1xf32> to vector<16x16xf32>
    %213 = arith.mulf %208, %212 : vector<16x16xf32>
    %cst_78 = arith.constant dense<0.000000e+00> : vector<16x16xf32>
    %214 = tpu.matmul %213, %201, %cst_78 {dimension_numbers = #tpu.dot_dimension_numbers<[1], [0], [0], [1], [0, 0, 1, 1], [], []>} : vector<16x16xf32>, vector<16x16xf32>, vector<16x16xf32> -> vector<16x16xf32>
    %215 = tpu.concatenate %198, %214 in 1 : vector<16x16xf32>, vector<16x16xf32> -> vector<16x32xf32>
    %c1_79 = arith.constant 1 : index
    %c0_80 = arith.constant 0 : index
    %c0_81 = arith.constant 0 : index
    %216 = vector.load %arg5[%c1_79, %c0_80, %c0_81] : memref<2x32x32xf32, #tpu.memory_space<vmem>>, vector<1x32x32xf32>
    %217 = vector.shape_cast %216 : vector<1x32x32xf32> to vector<32x32xf32>
    %cst_82 = arith.constant dense<0.000000e+00> : vector<16x32xf32>
    %218 = tpu.matmul %215, %217, %cst_82 {dimension_numbers = #tpu.dot_dimension_numbers<[1], [0], [0], [1], [0, 0, 1, 1], [], []>} : vector<16x32xf32>, vector<32x32xf32>, vector<16x32xf32> -> vector<16x32xf32>
    %c12 = arith.constant 12 : index
    %c0_83 = arith.constant 0 : index
    %219 = vector.load %arg9[%c12, %c0_83] : memref<24x128xf32, #tpu.memory_space<vmem>>, vector<1x32xf32>
    %220 = vector.broadcast %219 : vector<1x32xf32> to vector<16x32xf32>
    %221 = arith.addf %218, %220 : vector<16x32xf32>
    %222 = arith.addf %176, %221 : vector<16x32xf32>
    %c13 = arith.constant 13 : index
    %c0_84 = arith.constant 0 : index
    %223 = vector.load %arg9[%c13, %c0_84] : memref<24x128xf32, #tpu.memory_space<vmem>>, vector<1x32xf32>
    %c14 = arith.constant 14 : index
    %c0_85 = arith.constant 0 : index
    %224 = vector.load %arg9[%c14, %c0_85] : memref<24x128xf32, #tpu.memory_space<vmem>>, vector<1x32xf32>
    %cst_86 = arith.constant dense<0.000000e+00> : vector<16xf32>
    %225 = vector.multi_reduction <add>, %222, %cst_86 [1] : vector<16x32xf32> to vector<16xf32>
    %226 = vector.shape_cast %225 : vector<16xf32> to vector<16x1xf32>
    %cst_87 = arith.constant 3.200000e+01 : f32
    %227 = vector.broadcast %cst_87 : f32 to vector<16x1xf32>
    %228 = arith.divf %226, %227 : vector<16x1xf32>
    %229 = vector.broadcast %228 : vector<16x1xf32> to vector<16x32xf32>
    %230 = arith.subf %222, %229 : vector<16x32xf32>
    %231 = arith.mulf %230, %230 : vector<16x32xf32>
    %cst_88 = arith.constant dense<0.000000e+00> : vector<16xf32>
    %232 = vector.multi_reduction <add>, %231, %cst_88 [1] : vector<16x32xf32> to vector<16xf32>
    %233 = vector.shape_cast %232 : vector<16xf32> to vector<16x1xf32>
    %cst_89 = arith.constant 3.200000e+01 : f32
    %234 = vector.broadcast %cst_89 : f32 to vector<16x1xf32>
    %235 = arith.divf %233, %234 : vector<16x1xf32>
    %236 = vector.broadcast %228 : vector<16x1xf32> to vector<16x32xf32>
    %237 = arith.subf %222, %236 : vector<16x32xf32>
    %cst_90 = arith.constant 9.99999996E-13 : f32
    %238 = vector.broadcast %cst_90 : f32 to vector<16x1xf32>
    %239 = arith.addf %235, %238 : vector<16x1xf32>
    %240 = math.rsqrt %239 : vector<16x1xf32>
    %241 = vector.broadcast %240 : vector<16x1xf32> to vector<16x32xf32>
    %242 = arith.mulf %237, %241 : vector<16x32xf32>
    %243 = vector.broadcast %223 : vector<1x32xf32> to vector<16x32xf32>
    %244 = arith.mulf %242, %243 : vector<16x32xf32>
    %245 = vector.broadcast %224 : vector<1x32xf32> to vector<16x32xf32>
    %246 = arith.addf %244, %245 : vector<16x32xf32>
    %c1_91 = arith.constant 1 : index
    %c0_92 = arith.constant 0 : index
    %c0_93 = arith.constant 0 : index
    %247 = vector.load %arg6[%c1_91, %c0_92, %c0_93] : memref<2x32x64xf32, #tpu.memory_space<vmem>>, vector<1x32x64xf32>
    %248 = vector.shape_cast %247 : vector<1x32x64xf32> to vector<32x64xf32>
    %cst_94 = arith.constant dense<0.000000e+00> : vector<16x64xf32>
    %249 = tpu.matmul %246, %248, %cst_94 {dimension_numbers = #tpu.dot_dimension_numbers<[1], [0], [0], [1], [0, 0, 1, 1], [], []>} : vector<16x32xf32>, vector<32x64xf32>, vector<16x64xf32> -> vector<16x64xf32>
    %c15 = arith.constant 15 : index
    %c0_95 = arith.constant 0 : index
    %250 = vector.load %arg9[%c15, %c0_95] : memref<24x128xf32, #tpu.memory_space<vmem>>, vector<1x64xf32>
    %251 = vector.broadcast %250 : vector<1x64xf32> to vector<16x64xf32>
    %252 = arith.addf %249, %251 : vector<16x64xf32>
    %253 = arith.mulf %252, %252 : vector<16x64xf32>
    %254 = arith.mulf %252, %253 : vector<16x64xf32>
    %cst_96 = arith.constant 4.471500e-02 : f32
    %255 = vector.broadcast %cst_96 : f32 to vector<16x64xf32>
    %256 = arith.mulf %255, %254 : vector<16x64xf32>
    %257 = arith.addf %252, %256 : vector<16x64xf32>
    %cst_97 = arith.constant 0.797884583 : f32
    %258 = vector.broadcast %cst_97 : f32 to vector<16x64xf32>
    %259 = arith.mulf %258, %257 : vector<16x64xf32>
    %260 = math.tanh %259 : vector<16x64xf32>
    %cst_98 = arith.constant 1.000000e+00 : f32
    %261 = vector.broadcast %cst_98 : f32 to vector<16x64xf32>
    %262 = arith.addf %261, %260 : vector<16x64xf32>
    %cst_99 = arith.constant 5.000000e-01 : f32
    %263 = vector.broadcast %cst_99 : f32 to vector<16x64xf32>
    %264 = arith.mulf %263, %262 : vector<16x64xf32>
    %265 = arith.mulf %252, %264 : vector<16x64xf32>
    %c1_100 = arith.constant 1 : index
    %c0_101 = arith.constant 0 : index
    %c0_102 = arith.constant 0 : index
    %266 = vector.load %arg7[%c1_100, %c0_101, %c0_102] : memref<2x64x32xf32, #tpu.memory_space<vmem>>, vector<1x64x32xf32>
    %267 = vector.shape_cast %266 : vector<1x64x32xf32> to vector<64x32xf32>
    %cst_103 = arith.constant dense<0.000000e+00> : vector<16x32xf32>
    %268 = tpu.matmul %265, %267, %cst_103 {dimension_numbers = #tpu.dot_dimension_numbers<[1], [0], [0], [1], [0, 0, 1, 1], [], []>} : vector<16x64xf32>, vector<64x32xf32>, vector<16x32xf32> -> vector<16x32xf32>
    %c16 = arith.constant 16 : index
    %c0_104 = arith.constant 0 : index
    %269 = vector.load %arg9[%c16, %c0_104] : memref<24x128xf32, #tpu.memory_space<vmem>>, vector<1x32xf32>
    %270 = vector.broadcast %269 : vector<1x32xf32> to vector<16x32xf32>
    %271 = arith.addf %268, %270 : vector<16x32xf32>
    %272 = arith.addf %246, %271 : vector<16x32xf32>
    %c17 = arith.constant 17 : index
    %c0_105 = arith.constant 0 : index
    %273 = vector.load %arg9[%c17, %c0_105] : memref<24x128xf32, #tpu.memory_space<vmem>>, vector<1x32xf32>
    %c18 = arith.constant 18 : index
    %c0_106 = arith.constant 0 : index
    %274 = vector.load %arg9[%c18, %c0_106] : memref<24x128xf32, #tpu.memory_space<vmem>>, vector<1x32xf32>
    %cst_107 = arith.constant dense<0.000000e+00> : vector<16xf32>
    %275 = vector.multi_reduction <add>, %272, %cst_107 [1] : vector<16x32xf32> to vector<16xf32>
    %276 = vector.shape_cast %275 : vector<16xf32> to vector<16x1xf32>
    %cst_108 = arith.constant 3.200000e+01 : f32
    %277 = vector.broadcast %cst_108 : f32 to vector<16x1xf32>
    %278 = arith.divf %276, %277 : vector<16x1xf32>
    %279 = vector.broadcast %278 : vector<16x1xf32> to vector<16x32xf32>
    %280 = arith.subf %272, %279 : vector<16x32xf32>
    %281 = arith.mulf %280, %280 : vector<16x32xf32>
    %cst_109 = arith.constant dense<0.000000e+00> : vector<16xf32>
    %282 = vector.multi_reduction <add>, %281, %cst_109 [1] : vector<16x32xf32> to vector<16xf32>
    %283 = vector.shape_cast %282 : vector<16xf32> to vector<16x1xf32>
    %cst_110 = arith.constant 3.200000e+01 : f32
    %284 = vector.broadcast %cst_110 : f32 to vector<16x1xf32>
    %285 = arith.divf %283, %284 : vector<16x1xf32>
    %286 = vector.broadcast %278 : vector<16x1xf32> to vector<16x32xf32>
    %287 = arith.subf %272, %286 : vector<16x32xf32>
    %cst_111 = arith.constant 9.99999996E-13 : f32
    %288 = vector.broadcast %cst_111 : f32 to vector<16x1xf32>
    %289 = arith.addf %285, %288 : vector<16x1xf32>
    %290 = math.rsqrt %289 : vector<16x1xf32>
    %291 = vector.broadcast %290 : vector<16x1xf32> to vector<16x32xf32>
    %292 = arith.mulf %287, %291 : vector<16x32xf32>
    %293 = vector.broadcast %273 : vector<1x32xf32> to vector<16x32xf32>
    %294 = arith.mulf %292, %293 : vector<16x32xf32>
    %295 = vector.broadcast %274 : vector<1x32xf32> to vector<16x32xf32>
    %296 = arith.addf %294, %295 : vector<16x32xf32>
    %c0_112 = arith.constant 0 : index
    %c0_113 = arith.constant 0 : index
    %297 = vector.load %arg8[%c0_112, %c0_113] : memref<32x128xf32, #tpu.memory_space<vmem>>, vector<32x128xf32>
    %cst_114 = arith.constant dense<0.000000e+00> : vector<16x128xf32>
    %298 = tpu.matmul %296, %297, %cst_114 {dimension_numbers = #tpu.dot_dimension_numbers<[1], [0], [0], [1], [0, 0, 1, 1], [], []>} : vector<16x32xf32>, vector<32x128xf32>, vector<16x128xf32> -> vector<16x128xf32>
    %c2 = arith.constant 2 : index
    %c0_115 = arith.constant 0 : index
    %299 = vector.load %arg9[%c2, %c0_115] : memref<24x128xf32, #tpu.memory_space<vmem>>, vector<1x128xf32>
    %300 = vector.broadcast %299 : vector<1x128xf32> to vector<16x128xf32>
    %301 = arith.addf %298, %300 : vector<16x128xf32>
    %c0_116 = arith.constant 0 : index
    %c0_117 = arith.constant 0 : index
    %302 = vector.load %arg10[%c0_116, %c0_117] : memref<16x128xf32, #tpu.memory_space<vmem>>, vector<16x128xf32>
    tpu.vector_store %arg10[%c0_116, %c0_117], %301 {strides = array<i32>} : memref<16x128xf32, #tpu.memory_space<vmem>>, vector<16x128xf32>,
    return
  }
}

</mosaic_0001>

<llo_original>
// kernel: multi_task_forward.1
$region0: #{multi_task_forward.1}
  #allocation0 [shape = 'u32[]', space=smem, size = 0x4, offset = 0x4, fixed_abs, tag = 'smem constant byte address 0x4 - core index']
  #allocation1 [shape = 'u32[144,128]{1,0:T(1,128)}', space=vmem, size = 0x12000, scoped, tag = 'internal scratch']
  %s0 = inlined_call_operand.vmem [shape: s32[16,1], index: 0, kind: input, shape index: {}]
  %s1 = inlined_call_operand.vmem [shape: f32[1,16], index: 1, kind: input, shape index: {}]
  %s2 = inlined_call_operand.vmem [shape: f32[64,32], index: 2, kind: input, shape index: {}]
  %s3 = inlined_call_operand.vmem [shape: f32[16,32], index: 3, kind: input, shape index: {}]
  %s4 = inlined_call_operand.vmem [shape: f32[2,32,96], index: 4, kind: input, shape index: {}]
  %s5 = inlined_call_operand.vmem [shape: f32[2,32,32], index: 5, kind: input, shape index: {}]
  %s6 = inlined_call_operand.vmem [shape: f32[2,32,64], index: 6, kind: input, shape index: {}]
  %s7 = inlined_call_operand.vmem [shape: f32[2,64,32], index: 7, kind: input, shape index: {}]
  %s8 = inlined_call_operand.vmem [shape: f32[32,128], index: 8, kind: input, shape index: {}]
  %s9 = inlined_call_operand.hbm [shape: f32[24,128], index: 9, kind: input, shape index: {}]
  %s10 = inlined_call_operand.vmem [shape: f32[16,128], index: 10, kind: output, shape index: {}]
  %s11 = sld [smem:[#allocation0]]
  $region54: #{multi_task_forward.1} parent=0
    _
  %s13 = ssub.s32 1, %s11
  %s14 = scalar_select 0, %s13, %s11
  $region1: #{multi_task_forward.1} parent=0
    #allocation2 [shape = 'u8[12288]{0}', space=vmem, size = 0x3000, scoped, tag = 'input window, operand 9, single buffered']
    #allocation3 [shape = 's32[1]{0}', space=sflag, size = 0x4, scoped, tag = 'scoped memory for multi_task_forward.1']
    %15 = vsyncpa [#allocation3], 0
    // Predicated region
    $region2: #{multi_task_forward.1} parent=1 // pred_check
      _
    $region3: #{multi_task_forward.1} parent=1 // pred_check_branch
      %17 = sbr.rel (0) target = $region5
    $region4: #{multi_task_forward.1} parent=1 // pred_region
      _
    $region5: #{multi_task_forward.1} parent=1 // pred_fallthru
      _
    // Predicated region
    $region6: #{multi_task_forward.1} parent=1 // pred_check
      _
    $region7: #{multi_task_forward.1} parent=1 // pred_check_branch
      %19 = sbr.rel (0) target = $region9
    $region8: #{multi_task_forward.1} parent=1 // pred_region
      _
    $region9: #{multi_task_forward.1} parent=1 // pred_fallthru
      _
    // Predicated region
    $region10: #{multi_task_forward.1} parent=1 // pred_check
      _
    $region11: #{multi_task_forward.1} parent=1 // pred_check_branch
      %21 = sbr.rel (0) target = $region13
    $region12: #{multi_task_forward.1} parent=1 // pred_region
      _
    $region13: #{multi_task_forward.1} parent=1 // pred_fallthru
      _
    // Predicated region
    $region14: #{multi_task_forward.1} parent=1 // pred_check
      _
    $region15: #{multi_task_forward.1} parent=1 // pred_check_branch
      %23 = sbr.rel (0) target = $region17
    $region16: #{multi_task_forward.1} parent=1 // pred_region
      _
    $region17: #{multi_task_forward.1} parent=1 // pred_fallthru
      _
    // Predicated region
    $region18: #{multi_task_forward.1} parent=1 // pred_check
      _
    $region19: #{multi_task_forward.1} parent=1 // pred_check_branch
      %25 = sbr.rel (0) target = $region21
    $region20: #{multi_task_forward.1} parent=1 // pred_region
      _
    $region21: #{multi_task_forward.1} parent=1 // pred_fallthru
      _
    // Predicated region
    $region22: #{multi_task_forward.1} parent=1 // pred_check
      _
    $region23: #{multi_task_forward.1} parent=1 // pred_check_branch
      %27 = sbr.rel (0) target = $region25
    $region24: #{multi_task_forward.1} parent=1 // pred_region
      _
    $region25: #{multi_task_forward.1} parent=1 // pred_fallthru
      _
    // Predicated region
    $region26: #{multi_task_forward.1} parent=1 // pred_check
      _
    $region27: #{multi_task_forward.1} parent=1 // pred_check_branch
      %29 = sbr.rel (0) target = $region29
    $region28: #{multi_task_forward.1} parent=1 // pred_region
      _
    $region29: #{multi_task_forward.1} parent=1 // pred_fallthru
      _
    // Predicated region
    $region30: #{multi_task_forward.1} parent=1 // pred_check
      _
    $region31: #{multi_task_forward.1} parent=1 // pred_check_branch
      %31 = sbr.rel (0) target = $region33
    $region32: #{multi_task_forward.1} parent=1 // pred_region
      _
    $region33: #{multi_task_forward.1} parent=1 // pred_fallthru
      _
    // Predicated region
    $region34: #{multi_task_forward.1} parent=1 // pred_check
      _
    $region35: #{multi_task_forward.1} parent=1 // pred_check_branch
      %33 = sbr.rel (0) target = $region37
    $region36: #{multi_task_forward.1} parent=1 // pred_region
      _
    $region37: #{multi_task_forward.1} parent=1 // pred_fallthru
      _
    // Predicated region
    $region38: #{multi_task_forward.1} parent=1 // pred_check
      _
    $region39: #{multi_task_forward.1} parent=1 // pred_check_branch
      %35 = sbr.rel (0) target = $region41
    $region40: #{multi_task_forward.1} parent=1 // pred_region
      %s37 = ssub.s32 384, 384
      %38 = vsyncadd [#allocation3], %s37
      %s39 = sshll.u32 [#allocation2], 4
      %s40 = int_to_ptr.vmem [resolvable:$true] %s39
      %45 = dma.hbm_to_vmem [thread:$0]  %s9, 384, %s40, [#allocation3], 128, 128, 8
    $region41: #{multi_task_forward.1} parent=1 // pred_fallthru
      _
    // Predicated region
    $region42: #{multi_task_forward.1} parent=1 // pred_check
      _
    $region43: #{multi_task_forward.1} parent=1 // pred_check_branch
      %47 = sbr.rel (0) target = $region45
    $region44: #{multi_task_forward.1} parent=1 // pred_region
      %48 = dma.done [#allocation3], 384
    $region45: #{multi_task_forward.1} parent=1 // pred_fallthru
      _
    %v49 = vld [vmem:[%s0] sm:$0xff]
    %v50 = vld [vmem:[%s0 + $0x8] sm:$0xff]
    %v51 = vlaneseq
    %v52 = vand.u32 %v51, 127
    %53 = vset.pattern.permute.xlu0 0
    %54 = vperm.xlu0 %53, %v49
    %v55 = vpop.permute.xlu0 %54
    %56 = vset.pattern.permute.xlu0 0
    %57 = vperm.xlu0 %56, %v50
    %v58 = vpop.permute.xlu0 %57
    %vm59 = vcmp.eq.s32.totalorder %v55, %v52
    %vm60 = vcmp.eq.s32.totalorder %v58, %v52
    %v61 = vsel %vm59, 1, 0
    %v62 = vsel %vm60, 1, 0
    %v63 = vcvt.s32.f32 %v61
    %v64 = vcvt.s32.f32 %v62
    %v65 = vld [vmem:[%s2] sm:$0xff]
    %v66 = vld [vmem:[%s2 + $0x8] sm:$0xff]
    %v67 = vld [vmem:[%s2 + $0x10] sm:$0xff]
    %v68 = vld [vmem:[%s2 + $0x18] sm:$0xff]
    %v69 = vld [vmem:[%s2 + $0x20] sm:$0xff]
    %v70 = vld [vmem:[%s2 + $0x28] sm:$0xff]
    %v71 = vld [vmem:[%s2 + $0x30] sm:$0xff]
    %v72 = vld [vmem:[%s2 + $0x38] sm:$0xff]
    %vm73 = vcmask 523264
    %v75 = vsel %vm73, %v63, 0
    %v78 = vsel %vm73, %v64, 0
    %80 = vmatprep.subr.mxu0 0.0
    %81 = vmatpush1.msra.mxu0 %v65
    %82 = vmatprep.subr.mxu0 0.0
    %83 = vmatpush1.msra.mxu0 %v66
    %84 = vmatprep.subr.mxu0 0.0
    %85 = vmatpush1.msra.mxu0 %v67
    %86 = vmatprep.subr.mxu0 0.0
    %87 = vmatpush1.msra.mxu0 %v68
    %88 = vmatprep.subr.mxu0 0.0
    %89 = vmatpush1.msra.mxu0 %v69
    %90 = vmatprep.subr.mxu0 0.0
    %91 = vmatpush1.msra.mxu0 %v70
    %92 = vmatprep.subr.mxu0 0.0
    %93 = vmatpush1.msra.mxu0 %v71
    %94 = vmatprep.subr.mxu0 0.0
    %95 = vmatpush1.msra.mxu0 %v72
    %96 = vmatprep.subr.mxu0 0.0
    %97 = vmatpush1.msra.mxu0 0.0
    %98 = vmatprep.subr.mxu0 0.0
    %99 = vmatpush1.msra.mxu0 0.0
    %100 = vmatprep.subr.mxu0 0.0
    %101 = vmatpush1.msra.mxu0 0.0
    %102 = vmatprep.subr.mxu0 0.0
    %103 = vmatpush1.msra.mxu0 0.0
    %104 = vmatprep.subr.mxu0 0.0
    %105 = vmatpush1.msra.mxu0 0.0
    %106 = vmatprep.subr.mxu0 0.0
    %107 = vmatpush1.msra.mxu0 0.0
    %108 = vmatprep.subr.mxu0 0.0
    %109 = vmatpush1.msra.mxu0 0.0
    %110 = vmatprep.subr.mxu0 0.0
    %111 = vmatpush1.msra.mxu0 0.0
    %112 = vmatprep.subr.mxu0 0.0
    %113 = vmatpush1.msra.mxu0 0.0
    %114 = vmatprep.subr.mxu0 0.0
    %115 = vmatpush1.msra.mxu0 0.0
    %116 = vmatprep.subr.mxu0 0.0
    %117 = vmatpush1.msra.mxu0 0.0
    %118 = vmatprep.subr.mxu0 0.0
    %119 = vmatpush1.msra.mxu0 0.0
    %120 = vmatprep.subr.mxu0 0.0
    %121 = vmatpush1.msra.mxu0 0.0
    %122 = vmatprep.subr.mxu0 0.0
    %123 = vmatpush1.msra.mxu0 0.0
    %124 = vmatprep.subr.mxu0 0.0
    %125 = vmatpush1.msra.mxu0 0.0
    %126 = vmatprep.subr.mxu0 0.0
    %127 = vmatpush1.msra.mxu0 0.0
    %128 = vmatprep.subr.mxu0 0.0
    %129 = vmatpush1.msra.mxu0 0.0
    %130 = vmatprep.subr.mxu0 0.0
    %131 = vmatpush1.msra.mxu0 0.0
    %132 = vmatprep.subr.mxu0 0.0
    %133 = vmatpush1.msra.mxu0 0.0
    %134 = vmatprep.subr.mxu0 0.0
    %135 = vmatpush1.msra.mxu0 0.0
    %136 = vmatprep.subr.mxu0 0.0
    %137 = vmatpush1.msra.mxu0 0.0
    %138 = vmatprep.subr.mxu0 0.0
    %139 = vmatpush1.msra.mxu0 0.0
    %140 = vmatprep.subr.mxu0 0.0
    %141 = vmatpush1.msra.mxu0 0.0
    %142 = vmatprep.subr.mxu0 0.0
    %143 = vmatpush1.msra.mxu0 0.0
    %144 = vmatprep.mubr.f32.mxu0 0.0
    %145 = vmatmul.mubr.f32.gmra.mrb[0].mxu0 %v75
    %v146 = vpop.f32.mrb[0].mxu0
    %v147 = vadd.f32 0.0, %v146
    %v148 = vpop.f32.mrb[0].mxu0
    %149 = vmatprep.mubr.f32.mxu0 0.0
    %150 = vmatmul.mubr.f32.gmra.mrb[0].mxu0 %v78
    %v151 = vpop.f32.mrb[0].mxu0
    %v152 = vadd.f32 0.0, %v151
    %v153 = vpop.f32.mrb[0].mxu0
    %154 = vdwg.mxu0
    %v155 = vld [vmem:[%s3] sm:$0xff]
    %v156 = vadd.f32 %v147, %v155
    %v157 = vadd.f32 %v152, %v155
    %v158 = vld [vmem:[#allocation2] sm:$0x1]
    %v159 = vld [vmem:[#allocation2 + $0x1] sm:$0x1]
    %vm160 = vcmask 261120
    %v161 = vsel %vm160, %v156, 0.0
    %162 = vadd.xlane.f32.xlu0 %v161
    %v163 = vpop.xlane.xlu0 %162
    %v164 = vsel %vm160, %v157, 0.0
    %165 = vadd.xlane.f32.xlu0 %v164
    %v166 = vpop.xlane.xlu0 %165
    %v167 = vrcp.pop 32.0
    %v168 = vmul.f32 %v163, %v167
    %v169 = vmul.f32 %v166, %v167
    %v170 = vsub.f32 %v156, %v168
    %v171 = vsub.f32 %v157, %v169
    %v172 = vmul.f32 %v170, %v170
    %v173 = vmul.f32 %v171, %v171
    %v174 = vsel %vm160, %v172, 0.0
    %175 = vadd.xlane.f32.xlu0 %v174
    %v176 = vpop.xlane.xlu0 %175
    %v177 = vsel %vm160, %v173, 0.0
    %178 = vadd.xlane.f32.xlu0 %v177
    %v179 = vpop.xlane.xlu0 %178
    %v180 = vmul.f32 %v176, %v167
    %v181 = vmul.f32 %v179, %v167
    %v182 = vadd.f32 %v180, 1e-12
    %v183 = vadd.f32 %v181, 1e-12
    %v184 = vrsqrt.pop %v182
    %v185 = vrsqrt.pop %v183
    %v186 = vmul.f32 %v170, %v184
    %v187 = vmul.f32 %v171, %v185
    %v188 = vlaneseq
    %v189 = vshrl.u32 %v188, 7
    %v190 = vsub.s32 0, %v189
    %v191 = vrot.slane %v158, %v190
    %v192 = vmul.f32 %v186, %v191
    %v193 = vmul.f32 %v187, %v191
    %v194 = vlaneseq
    %v195 = vshrl.u32 %v194, 7
    %v196 = vsub.s32 0, %v195
    %v197 = vrot.slane %v159, %v196
    %v198 = vadd.f32 %v192, %v197
    %v199 = vadd.f32 %v193, %v197
    %v200 = vld [vmem:[%s1] sm:$0x1]
    %v201 = vlaneseq
    %v202 = vshrl.u32 %v201, 7
    %v203 = vadd.s32 %v202, 8
    %v204 = vcvt.s32.f32 %v202
    %v205 = vcvt.s32.f32 %v203
    %v206 = vmul.f32 %v204, 0.125
    %v207 = vmul.f32 %v205, 0.125
    %v208 = vfloor.f32 %v206
    %v209 = vfloor.f32 %v207
    %v210 = vcvt.s32.f32 %v52
    %v211 = vmul.f32 %v210, 0.125
    %v212 = vfloor.f32 %v211
    %vm213 = vcmp.eq.f32.partialorder %v208, %v212
    %vm214 = vcmp.eq.f32.partialorder %v209, %v212
    %vm215 = vcmp.gt.f32.partialorder %v200, 0.5
    %v216 = vsel %vm215, 1, 0
    %v217 = vlaneseq
    %v218 = vshrl.u32 %v217, 7
    %v219 = vsub.s32 0, %v218
    %v220 = vrot.slane %v216, %v219
    %vm221 = vcmp.eq.s32.totalorder %v220, 1
    %vm222 = vmand %vm213, %vm221
    %vm223 = vmand %vm214, %vm221
    %v224 = vsel %vm222, 0.0, -10000.0
    %v225 = vsel %vm223, 0.0, -10000.0
    %v226 = vld [vmem:[%s4] sm:$0xff]
    %v227 = vld [vmem:[%s4 + $0x8] sm:$0xff]
    %v228 = vld [vmem:[%s4 + $0x10] sm:$0xff]
    %v229 = vld [vmem:[%s4 + $0x18] sm:$0xff]
    %v230 = vld [vmem:[#allocation2 + $0x3] sm:$0x1]
    %v231 = vlaneseq
    %v232 = vshrl.u32 %v231, 7
    %v233 = vsub.s32 0, %v232
    %v234 = vrot.slane %v230, %v233
    %v236 = vsel %vm160, %v198, 0
    %v239 = vsel %vm160, %v199, 0
    %241 = vmatprep.subr.mxu0 0.0
    %242 = vmatpush1.msra.mxu0 %v226
    %243 = vmatprep.subr.mxu0 0.0
    %244 = vmatpush1.msra.mxu0 %v227
    %245 = vmatprep.subr.mxu0 0.0
    %246 = vmatpush1.msra.mxu0 %v228
    %247 = vmatprep.subr.mxu0 0.0
    %248 = vmatpush1.msra.mxu0 %v229
    %249 = vmatprep.subr.mxu0 0.0
    %250 = vmatpush1.msra.mxu0 0.0
    %251 = vmatprep.subr.mxu0 0.0
    %252 = vmatpush1.msra.mxu0 0.0
    %253 = vmatprep.subr.mxu0 0.0
    %254 = vmatpush1.msra.mxu0 0.0
    %255 = vmatprep.subr.mxu0 0.0
    %256 = vmatpush1.msra.mxu0 0.0
    %257 = vmatprep.subr.mxu0 0.0
    %258 = vmatpush1.msra.mxu0 0.0
    %259 = vmatprep.subr.mxu0 0.0
    %260 = vmatpush1.msra.mxu0 0.0
    %261 = vmatprep.subr.mxu0 0.0
    %262 = vmatpush1.msra.mxu0 0.0
    %263 = vmatprep.subr.mxu0 0.0
    %264 = vmatpush1.msra.mxu0 0.0
    %265 = vmatprep.subr.mxu0 0.0
    %266 = vmatpush1.msra.mxu0 0.0
    %267 = vmatprep.subr.mxu0 0.0
    %268 = vmatpush1.msra.mxu0 0.0
    %269 = vmatprep.subr.mxu0 0.0
    %270 = vmatpush1.msra.mxu0 0.0
    %271 = vmatprep.subr.mxu0 0.0
    %272 = vmatpush1.msra.mxu0 0.0
    %273 = vmatprep.subr.mxu0 0.0
    %274 = vmatpush1.msra.mxu0 0.0
    %275 = vmatprep.subr.mxu0 0.0
    %276 = vmatpush1.msra.mxu0 0.0
    %277 = vmatprep.subr.mxu0 0.0
    %278 = vmatpush1.msra.mxu0 0.0
    %279 = vmatprep.subr.mxu0 0.0
    %280 = vmatpush1.msra.mxu0 0.0
    %281 = vmatprep.subr.mxu0 0.0
    %282 = vmatpush1.msra.mxu0 0.0
    %283 = vmatprep.subr.mxu0 0.0
    %284 = vmatpush1.msra.mxu0 0.0
    %285 = vmatprep.subr.mxu0 0.0
    %286 = vmatpush1.msra.mxu0 0.0
    %287 = vmatprep.subr.mxu0 0.0
    %288 = vmatpush1.msra.mxu0 0.0
    %289 = vmatprep.subr.mxu0 0.0
    %290 = vmatpush1.msra.mxu0 0.0
    %291 = vmatprep.subr.mxu0 0.0
    %292 = vmatpush1.msra.mxu0 0.0
    %293 = vmatprep.subr.mxu0 0.0
    %294 = vmatpush1.msra.mxu0 0.0
    %295 = vmatprep.subr.mxu0 0.0
    %296 = vmatpush1.msra.mxu0 0.0
    %297 = vmatprep.subr.mxu0 0.0
    %298 = vmatpush1.msra.mxu0 0.0
    %299 = vmatprep.subr.mxu0 0.0
    %300 = vmatpush1.msra.mxu0 0.0
    %301 = vmatprep.subr.mxu0 0.0
    %302 = vmatpush1.msra.mxu0 0.0
    %303 = vmatprep.subr.mxu0 0.0
    %304 = vmatpush1.msra.mxu0 0.0
    %305 = vmatprep.mubr.f32.mxu0 0.0
    %306 = vmatmul.mubr.f32.gmra.mrb[0].mxu0 %v236
    %v307 = vpop.f32.mrb[0].mxu0
    %v308 = vadd.f32 %v234, %v307
    %v309 = vpop.f32.mrb[0].mxu0
    %310 = vmatprep.mubr.f32.mxu0 0.0
    %311 = vmatmul.mubr.f32.gmra.mrb[0].mxu0 %v239
    %v312 = vpop.f32.mrb[0].mxu0
    %v313 = vadd.f32 %v234, %v312
    %v314 = vpop.f32.mrb[0].mxu0
    %315 = vdwg.mxu0
    %318 = vrot.lane.b32.xlu0 %v308, 96
    %v319 = vpop.permute.xlu0 %318
    %320 = vrot.lane.b32.xlu0 %v313, 96
    %v321 = vpop.permute.xlu0 %320
    %vm322 = vcmask 130048
    %v323 = vsel %vm322, %v308, 0
    %v325 = vsel %vm322, %v313, 0
    %v327 = vsel %vm322, %v319, 0
    %v329 = vsel %vm322, %v321, 0
    %331 = vmatprep.subr.mxu0 0.0
    %332 = vmatpush1.xpose.msra.mxu0 %v327
    %333 = vmatprep.subr.mxu0 0.0
    %334 = vmatpush1.xpose.msra.mxu0 %v329
    %335 = vmatprep.subr.mxu0 0.0
    %336 = vmatpush1.xpose.msra.mxu0 0.0
    %337 = vmatprep.subr.mxu0 0.0
    %338 = vmatpush1.xpose.msra.mxu0 0.0
    %339 = vmatprep.subr.mxu0 0.0
    %340 = vmatpush1.xpose.msra.mxu0 0.0
    %341 = vmatprep.subr.mxu0 0.0
    %342 = vmatpush1.xpose.msra.mxu0 0.0
    %343 = vmatprep.subr.mxu0 0.0
    %344 = vmatpush1.xpose.msra.mxu0 0.0
    %345 = vmatprep.subr.mxu0 0.0
    %346 = vmatpush1.xpose.msra.mxu0 0.0
    %347 = vmatprep.subr.mxu0 0.0
    %348 = vmatpush1.xpose.msra.mxu0 0.0
    %349 = vmatprep.subr.mxu0 0.0
    %350 = vmatpush1.xpose.msra.mxu0 0.0
    %351 = vmatprep.subr.mxu0 0.0
    %352 = vmatpush1.xpose.msra.mxu0 0.0
    %353 = vmatprep.subr.mxu0 0.0
    %354 = vmatpush1.xpose.msra.mxu0 0.0
    %355 = vmatprep.subr.mxu0 0.0
    %356 = vmatpush1.xpose.msra.mxu0 0.0
    %357 = vmatprep.subr.mxu0 0.0
    %358 = vmatpush1.xpose.msra.mxu0 0.0
    %359 = vmatprep.subr.mxu0 0.0
    %360 = vmatpush1.xpose.msra.mxu0 0.0
    %361 = vmatprep.subr.mxu0 0.0
    %362 = vmatpush1.xpose.msra.mxu0 0.0
    %363 = vmatprep.subr.mxu0 0.0
    %364 = vmatpush1.xpose.msra.mxu0 0.0
    %365 = vmatprep.subr.mxu0 0.0
    %366 = vmatpush1.xpose.msra.mxu0 0.0
    %367 = vmatprep.subr.mxu0 0.0
    %368 = vmatpush1.xpose.msra.mxu0 0.0
    %369 = vmatprep.subr.mxu0 0.0
    %370 = vmatpush1.xpose.msra.mxu0 0.0
    %371 = vmatprep.subr.mxu0 0.0
    %372 = vmatpush1.xpose.msra.mxu0 0.0
    %373 = vmatprep.subr.mxu0 0.0
    %374 = vmatpush1.xpose.msra.mxu0 0.0
    %375 = vmatprep.subr.mxu0 0.0
    %376 = vmatpush1.xpose.msra.mxu0 0.0
    %377 = vmatprep.subr.mxu0 0.0
    %378 = vmatpush1.xpose.msra.mxu0 0.0
    %379 = vmatprep.subr.mxu0 0.0
    %380 = vmatpush1.xpose.msra.mxu0 0.0
    %381 = vmatprep.subr.mxu0 0.0
    %382 = vmatpush1.xpose.msra.mxu0 0.0
    %383 = vmatprep.subr.mxu0 0.0
    %384 = vmatpush1.xpose.msra.mxu0 0.0
    %385 = vmatprep.subr.mxu0 0.0
    %386 = vmatpush1.xpose.msra.mxu0 0.0
    %387 = vmatprep.subr.mxu0 0.0
    %388 = vmatpush1.xpose.msra.mxu0 0.0
    %389 = vmatprep.subr.mxu0 0.0
    %390 = vmatpush1.xpose.msra.mxu0 0.0
    %391 = vmatprep.subr.mxu0 0.0
    %392 = vmatpush1.xpose.msra.mxu0 0.0
    %393 = vmatprep.subr.mxu0 0.0
    %394 = vmatpush1.xpose.msra.mxu0 0.0
    %395 = vmatprep.mubr.f32.mxu0 0.0
    %396 = vmatmul.mubr.f32.gmra.mrb[0].mxu0 %v323
    %v397 = vpop.f32.mrb[0].mxu0
    %v398 = vadd.f32 %v224, %v397
    %v399 = vpop.f32.mrb[0].mxu0
    %400 = vmatprep.mubr.f32.mxu0 0.0
    %401 = vmatmul.mubr.f32.gmra.mrb[0].mxu0 %v325
    %v402 = vpop.f32.mrb[0].mxu0
    %v403 = vadd.f32 %v225, %v402
    %v404 = vpop.f32.mrb[0].mxu0
    %405 = vdwg.mxu0
    %v406 = vsel %vm322, %v398, -inf
    %407 = vmax.xlane.f32.xlu0 %v406
    %v408 = vpop.xlane.xlu0 %407
    %v409 = vsel %vm322, %v403, -inf
    %410 = vmax.xlane.f32.xlu0 %v409
    %v411 = vpop.xlane.xlu0 %410
    %v412 = vsub.f32 %v398, %v408
    %v413 = vsub.f32 %v403, %v411
    %v414 = vmul.f32 %v412, 1.442695
    %v415 = vpow.pop %v414
    %v416 = vmul.f32 %v413, 1.442695
    %v417 = vpow.pop %v416
    %v418 = vsel %vm322, %v415, 0.0
    %419 = vadd.xlane.f32.xlu0 %v418
    %v420 = vpop.xlane.xlu0 %419
    %v421 = vsel %vm322, %v417, 0.0
    %422 = vadd.xlane.f32.xlu0 %v421
    %v423 = vpop.xlane.xlu0 %422
    %v424 = vrcp.pop %v420
    %v425 = vrcp.pop %v423
    %v426 = vmul.f32 %v415, %v424
    %v427 = vmul.f32 %v417, %v425
    %428 = vrot.lane.b32.xlu0 %v308, 64
    %v429 = vpop.permute.xlu0 %428
    %430 = vrot.lane.b32.xlu0 %v313, 64
    %v431 = vpop.permute.xlu0 %430
    %v435 = vsel %vm322, %v426, 0
    %v438 = vsel %vm322, %v427, 0
    %440 = vmatprep.subr.mxu0 0.0
    %441 = vmatpush1.msra.mxu0 %v429
    %442 = vmatprep.subr.mxu0 0.0
    %443 = vmatpush1.msra.mxu0 %v431
    %444 = vmatprep.subr.mxu0 0.0
    %445 = vmatpush1.msra.mxu0 0.0
    %446 = vmatprep.subr.mxu0 0.0
    %447 = vmatpush1.msra.mxu0 0.0
    %448 = vmatprep.subr.mxu0 0.0
    %449 = vmatpush1.msra.mxu0 0.0
    %450 = vmatprep.subr.mxu0 0.0
    %451 = vmatpush1.msra.mxu0 0.0
    %452 = vmatprep.subr.mxu0 0.0
    %453 = vmatpush1.msra.mxu0 0.0
    %454 = vmatprep.subr.mxu0 0.0
    %455 = vmatpush1.msra.mxu0 0.0
    %456 = vmatprep.subr.mxu0 0.0
    %457 = vmatpush1.msra.mxu0 0.0
    %458 = vmatprep.subr.mxu0 0.0
    %459 = vmatpush1.msra.mxu0 0.0
    %460 = vmatprep.subr.mxu0 0.0
    %461 = vmatpush1.msra.mxu0 0.0
    %462 = vmatprep.subr.mxu0 0.0
    %463 = vmatpush1.msra.mxu0 0.0
    %464 = vmatprep.subr.mxu0 0.0
    %465 = vmatpush1.msra.mxu0 0.0
    %466 = vmatprep.subr.mxu0 0.0
    %467 = vmatpush1.msra.mxu0 0.0
    %468 = vmatprep.subr.mxu0 0.0
    %469 = vmatpush1.msra.mxu0 0.0
    %470 = vmatprep.subr.mxu0 0.0
    %471 = vmatpush1.msra.mxu0 0.0
    %472 = vmatprep.subr.mxu0 0.0
    %473 = vmatpush1.msra.mxu0 0.0
    %474 = vmatprep.subr.mxu0 0.0
    %475 = vmatpush1.msra.mxu0 0.0
    %476 = vmatprep.subr.mxu0 0.0
    %477 = vmatpush1.msra.mxu0 0.0
    %478 = vmatprep.subr.mxu0 0.0
    %479 = vmatpush1.msra.mxu0 0.0
    %480 = vmatprep.subr.mxu0 0.0
    %481 = vmatpush1.msra.mxu0 0.0
    %482 = vmatprep.subr.mxu0 0.0
    %483 = vmatpush1.msra.mxu0 0.0
    %484 = vmatprep.subr.mxu0 0.0
    %485 = vmatpush1.msra.mxu0 0.0
    %486 = vmatprep.subr.mxu0 0.0
    %487 = vmatpush1.msra.mxu0 0.0
    %488 = vmatprep.subr.mxu0 0.0
    %489 = vmatpush1.msra.mxu0 0.0
    %490 = vmatprep.subr.mxu0 0.0
    %491 = vmatpush1.msra.mxu0 0.0
    %492 = vmatprep.subr.mxu0 0.0
    %493 = vmatpush1.msra.mxu0 0.0
    %494 = vmatprep.subr.mxu0 0.0
    %495 = vmatpush1.msra.mxu0 0.0
    %496 = vmatprep.subr.mxu0 0.0
    %497 = vmatpush1.msra.mxu0 0.0
    %498 = vmatprep.subr.mxu0 0.0
    %499 = vmatpush1.msra.mxu0 0.0
    %500 = vmatprep.subr.mxu0 0.0
    %501 = vmatpush1.msra.mxu0 0.0
    %502 = vmatprep.subr.mxu0 0.0
    %503 = vmatpush1.msra.mxu0 0.0
    %504 = vmatprep.mubr.f32.mxu0 0.0
    %505 = vmatmul.mubr.f32.gmra.mrb[0].mxu0 %v435
    %v506 = vpop.f32.mrb[0].mxu0
    %v507 = vadd.f32 0.0, %v506
    %v508 = vpop.f32.mrb[0].mxu0
    %509 = vmatprep.mubr.f32.mxu0 0.0
    %510 = vmatmul.mubr.f32.gmra.mrb[0].mxu0 %v438
    %v511 = vpop.f32.mrb[0].mxu0
    %v512 = vadd.f32 0.0, %v511
    %v513 = vpop.f32.mrb[0].mxu0
    %514 = vdwg.mxu0
    %515 = vrot.lane.b32.xlu0 %v308, 112
    %v516 = vpop.permute.xlu0 %515
    %517 = vrot.lane.b32.xlu0 %v313, 112
    %v518 = vpop.permute.xlu0 %517
    %519 = vrot.lane.b32.xlu0 %v308, 80
    %v520 = vpop.permute.xlu0 %519
    %521 = vrot.lane.b32.xlu0 %v313, 80
    %v522 = vpop.permute.xlu0 %521
    %v523 = vsel %vm322, %v516, 0
    %v525 = vsel %vm322, %v518, 0
    %v527 = vsel %vm322, %v520, 0
    %v529 = vsel %vm322, %v522, 0
    %531 = vmatprep.subr.mxu0 0.0
    %532 = vmatpush1.xpose.msra.mxu0 %v527
    %533 = vmatprep.subr.mxu0 0.0
    %534 = vmatpush1.xpose.msra.mxu0 %v529
    %535 = vmatprep.subr.mxu0 0.0
    %536 = vmatpush1.xpose.msra.mxu0 0.0
    %537 = vmatprep.subr.mxu0 0.0
    %538 = vmatpush1.xpose.msra.mxu0 0.0
    %539 = vmatprep.subr.mxu0 0.0
    %540 = vmatpush1.xpose.msra.mxu0 0.0
    %541 = vmatprep.subr.mxu0 0.0
    %542 = vmatpush1.xpose.msra.mxu0 0.0
    %543 = vmatprep.subr.mxu0 0.0
    %544 = vmatpush1.xpose.msra.mxu0 0.0
    %545 = vmatprep.subr.mxu0 0.0
    %546 = vmatpush1.xpose.msra.mxu0 0.0
    %547 = vmatprep.subr.mxu0 0.0
    %548 = vmatpush1.xpose.msra.mxu0 0.0
    %549 = vmatprep.subr.mxu0 0.0
    %550 = vmatpush1.xpose.msra.mxu0 0.0
    %551 = vmatprep.subr.mxu0 0.0
    %552 = vmatpush1.xpose.msra.mxu0 0.0
    %553 = vmatprep.subr.mxu0 0.0
    %554 = vmatpush1.xpose.msra.mxu0 0.0
    %555 = vmatprep.subr.mxu0 0.0
    %556 = vmatpush1.xpose.msra.mxu0 0.0
    %557 = vmatprep.subr.mxu0 0.0
    %558 = vmatpush1.xpose.msra.mxu0 0.0
    %559 = vmatprep.subr.mxu0 0.0
    %560 = vmatpush1.xpose.msra.mxu0 0.0
    %561 = vmatprep.subr.mxu0 0.0
    %562 = vmatpush1.xpose.msra.mxu0 0.0
    %563 = vmatprep.subr.mxu0 0.0
    %564 = vmatpush1.xpose.msra.mxu0 0.0
    %565 = vmatprep.subr.mxu0 0.0
    %566 = vmatpush1.xpose.msra.mxu0 0.0
    %567 = vmatprep.subr.mxu0 0.0
    %568 = vmatpush1.xpose.msra.mxu0 0.0
    %569 = vmatprep.subr.mxu0 0.0
    %570 = vmatpush1.xpose.msra.mxu0 0.0
    %571 = vmatprep.subr.mxu0 0.0
    %572 = vmatpush1.xpose.msra.mxu0 0.0
    %573 = vmatprep.subr.mxu0 0.0
    %574 = vmatpush1.xpose.msra.mxu0 0.0
    %575 = vmatprep.subr.mxu0 0.0
    %576 = vmatpush1.xpose.msra.mxu0 0.0
    %577 = vmatprep.subr.mxu0 0.0
    %578 = vmatpush1.xpose.msra.mxu0 0.0
    %579 = vmatprep.subr.mxu0 0.0
    %580 = vmatpush1.xpose.msra.mxu0 0.0
    %581 = vmatprep.subr.mxu0 0.0
    %582 = vmatpush1.xpose.msra.mxu0 0.0
    %583 = vmatprep.subr.mxu0 0.0
    %584 = vmatpush1.xpose.msra.mxu0 0.0
    %585 = vmatprep.subr.mxu0 0.0
    %586 = vmatpush1.xpose.msra.mxu0 0.0
    %587 = vmatprep.subr.mxu0 0.0
    %588 = vmatpush1.xpose.msra.mxu0 0.0
    %589 = vmatprep.subr.mxu0 0.0
    %590 = vmatpush1.xpose.msra.mxu0 0.0
    %591 = vmatprep.subr.mxu0 0.0
    %592 = vmatpush1.xpose.msra.mxu0 0.0
    %593 = vmatprep.subr.mxu0 0.0
    %594 = vmatpush1.xpose.msra.mxu0 0.0
    %595 = vmatprep.mubr.f32.mxu0 0.0
    %596 = vmatmul.mubr.f32.gmra.mrb[0].mxu0 %v523
    %v597 = vpop.f32.mrb[0].mxu0
    %v598 = vadd.f32 %v224, %v597
    %v599 = vpop.f32.mrb[0].mxu0
    %600 = vmatprep.mubr.f32.mxu0 0.0
    %601 = vmatmul.mubr.f32.gmra.mrb[0].mxu0 %v525
    %v602 = vpop.f32.mrb[0].mxu0
    %v603 = vadd.f32 %v225, %v602
    %v604 = vpop.f32.mrb[0].mxu0
    %605 = vdwg.mxu0
    %v606 = vsel %vm322, %v598, -inf
    %607 = vmax.xlane.f32.xlu0 %v606
    %v608 = vpop.xlane.xlu0 %607
    %v609 = vsel %vm322, %v603, -inf
    %610 = vmax.xlane.f32.xlu0 %v609
    %v611 = vpop.xlane.xlu0 %610
    %v612 = vsub.f32 %v598, %v608
    %v613 = vsub.f32 %v603, %v611
    %v614 = vmul.f32 %v612, 1.442695
    %v615 = vpow.pop %v614
    %v616 = vmul.f32 %v613, 1.442695
    %v617 = vpow.pop %v616
    %v618 = vsel %vm322, %v615, 0.0
    %619 = vadd.xlane.f32.xlu0 %v618
    %v620 = vpop.xlane.xlu0 %619
    %v621 = vsel %vm322, %v617, 0.0
    %622 = vadd.xlane.f32.xlu0 %v621
    %v623 = vpop.xlane.xlu0 %622
    %v624 = vrcp.pop %v620
    %v625 = vrcp.pop %v623
    %v626 = vmul.f32 %v615, %v624
    %v627 = vmul.f32 %v617, %v625
    %628 = vrot.lane.b32.xlu0 %v308, 48
    %v629 = vpop.permute.xlu0 %628
    %630 = vrot.lane.b32.xlu0 %v313, 48
    %v631 = vpop.permute.xlu0 %630
    %v635 = vsel %vm322, %v626, 0
    %v638 = vsel %vm322, %v627, 0
    %640 = vmatprep.subr.mxu0 0.0
    %641 = vmatpush1.msra.mxu0 %v629
    %642 = vmatprep.subr.mxu0 0.0
    %643 = vmatpush1.msra.mxu0 %v631
    %644 = vmatprep.subr.mxu0 0.0
    %645 = vmatpush1.msra.mxu0 0.0
    %646 = vmatprep.subr.mxu0 0.0
    %647 = vmatpush1.msra.mxu0 0.0
    %648 = vmatprep.subr.mxu0 0.0
    %649 = vmatpush1.msra.mxu0 0.0
    %650 = vmatprep.subr.mxu0 0.0
    %651 = vmatpush1.msra.mxu0 0.0
    %652 = vmatprep.subr.mxu0 0.0
    %653 = vmatpush1.msra.mxu0 0.0
    %654 = vmatprep.subr.mxu0 0.0
    %655 = vmatpush1.msra.mxu0 0.0
    %656 = vmatprep.subr.mxu0 0.0
    %657 = vmatpush1.msra.mxu0 0.0
    %658 = vmatprep.subr.mxu0 0.0
    %659 = vmatpush1.msra.mxu0 0.0
    %660 = vmatprep.subr.mxu0 0.0
    %661 = vmatpush1.msra.mxu0 0.0
    %662 = vmatprep.subr.mxu0 0.0
    %663 = vmatpush1.msra.mxu0 0.0
    %664 = vmatprep.subr.mxu0 0.0
    %665 = vmatpush1.msra.mxu0 0.0
    %666 = vmatprep.subr.mxu0 0.0
    %667 = vmatpush1.msra.mxu0 0.0
    %668 = vmatprep.subr.mxu0 0.0
    %669 = vmatpush1.msra.mxu0 0.0
    %670 = vmatprep.subr.mxu0 0.0
    %671 = vmatpush1.msra.mxu0 0.0
    %672 = vmatprep.subr.mxu0 0.0
    %673 = vmatpush1.msra.mxu0 0.0
    %674 = vmatprep.subr.mxu0 0.0
    %675 = vmatpush1.msra.mxu0 0.0
    %676 = vmatprep.subr.mxu0 0.0
    %677 = vmatpush1.msra.mxu0 0.0
    %678 = vmatprep.subr.mxu0 0.0
    %679 = vmatpush1.msra.mxu0 0.0
    %680 = vmatprep.subr.mxu0 0.0
    %681 = vmatpush1.msra.mxu0 0.0
    %682 = vmatprep.subr.mxu0 0.0
    %683 = vmatpush1.msra.mxu0 0.0
    %684 = vmatprep.subr.mxu0 0.0
    %685 = vmatpush1.msra.mxu0 0.0
    %686 = vmatprep.subr.mxu0 0.0
    %687 = vmatpush1.msra.mxu0 0.0
    %688 = vmatprep.subr.mxu0 0.0
    %689 = vmatpush1.msra.mxu0 0.0
    %690 = vmatprep.subr.mxu0 0.0
    %691 = vmatpush1.msra.mxu0 0.0
    %692 = vmatprep.subr.mxu0 0.0
    %693 = vmatpush1.msra.mxu0 0.0
    %694 = vmatprep.subr.mxu0 0.0
    %695 = vmatpush1.msra.mxu0 0.0
    %696 = vmatprep.subr.mxu0 0.0
    %697 = vmatpush1.msra.mxu0 0.0
    %698 = vmatprep.subr.mxu0 0.0
    %699 = vmatpush1.msra.mxu0 0.0
    %700 = vmatprep.subr.mxu0 0.0
    %701 = vmatpush1.msra.mxu0 0.0
    %702 = vmatprep.subr.mxu0 0.0
    %703 = vmatpush1.msra.mxu0 0.0
    %704 = vmatprep.mubr.f32.mxu0 0.0
    %705 = vmatmul.mubr.f32.gmra.mrb[0].mxu0 %v635
    %v706 = vpop.f32.mrb[0].mxu0
    %v707 = vadd.f32 0.0, %v706
    %v708 = vpop.f32.mrb[0].mxu0
    %709 = vmatprep.mubr.f32.mxu0 0.0
    %710 = vmatmul.mubr.f32.gmra.mrb[0].mxu0 %v638
    %v711 = vpop.f32.mrb[0].mxu0
    %v712 = vadd.f32 0.0, %v711
    %v713 = vpop.f32.mrb[0].mxu0
    %714 = vdwg.mxu0
    %717 = vrot.lane.b32.xlu0 %v707, 16
    %v718 = vpop.permute.xlu0 %717
    %719 = vrot.lane.b32.xlu0 %v712, 16
    %v720 = vpop.permute.xlu0 %719
    %v723 = vsel %vm322, %v507, %v718
    %v724 = vsel %vm322, %v512, %v720
    %v725 = vld [vmem:[%s5] sm:$0xff]
    %v726 = vld [vmem:[%s5 + $0x8] sm:$0xff]
    %v727 = vld [vmem:[%s5 + $0x10] sm:$0xff]
    %v728 = vld [vmem:[%s5 + $0x18] sm:$0xff]
    %v729 = vld [vmem:[#allocation2 + $0x4] sm:$0x1]
    %v730 = vlaneseq
    %v731 = vshrl.u32 %v730, 7
    %v732 = vsub.s32 0, %v731
    %v733 = vrot.slane %v729, %v732
    %v735 = vsel %vm160, %v723, 0
    %v738 = vsel %vm160, %v724, 0
    %740 = vmatprep.subr.mxu0 0.0
    %741 = vmatpush1.msra.mxu0 %v725
    %742 = vmatprep.subr.mxu0 0.0
    %743 = vmatpush1.msra.mxu0 %v726
    %744 = vmatprep.subr.mxu0 0.0
    %745 = vmatpush1.msra.mxu0 %v727
    %746 = vmatprep.subr.mxu0 0.0
    %747 = vmatpush1.msra.mxu0 %v728
    %748 = vmatprep.subr.mxu0 0.0
    %749 = vmatpush1.msra.mxu0 0.0
    %750 = vmatprep.subr.mxu0 0.0
    %751 = vmatpush1.msra.mxu0 0.0
    %752 = vmatprep.subr.mxu0 0.0
    %753 = vmatpush1.msra.mxu0 0.0
    %754 = vmatprep.subr.mxu0 0.0
    %755 = vmatpush1.msra.mxu0 0.0
    %756 = vmatprep.subr.mxu0 0.0
    %757 = vmatpush1.msra.mxu0 0.0
    %758 = vmatprep.subr.mxu0 0.0
    %759 = vmatpush1.msra.mxu0 0.0
    %760 = vmatprep.subr.mxu0 0.0
    %761 = vmatpush1.msra.mxu0 0.0
    %762 = vmatprep.subr.mxu0 0.0
    %763 = vmatpush1.msra.mxu0 0.0
    %764 = vmatprep.subr.mxu0 0.0
    %765 = vmatpush1.msra.mxu0 0.0
    %766 = vmatprep.subr.mxu0 0.0
    %767 = vmatpush1.msra.mxu0 0.0
    %768 = vmatprep.subr.mxu0 0.0
    %769 = vmatpush1.msra.mxu0 0.0
    %770 = vmatprep.subr.mxu0 0.0
    %771 = vmatpush1.msra.mxu0 0.0
    %772 = vmatprep.subr.mxu0 0.0
    %773 = vmatpush1.msra.mxu0 0.0
    %774 = vmatprep.subr.mxu0 0.0
    %775 = vmatpush1.msra.mxu0 0.0
    %776 = vmatprep.subr.mxu0 0.0
    %777 = vmatpush1.msra.mxu0 0.0
    %778 = vmatprep.subr.mxu0 0.0
    %779 = vmatpush1.msra.mxu0 0.0
    %780 = vmatprep.subr.mxu0 0.0
    %781 = vmatpush1.msra.mxu0 0.0
    %782 = vmatprep.subr.mxu0 0.0
    %783 = vmatpush1.msra.mxu0 0.0
    %784 = vmatprep.subr.mxu0 0.0
    %785 = vmatpush1.msra.mxu0 0.0
    %786 = vmatprep.subr.mxu0 0.0
    %787 = vmatpush1.msra.mxu0 0.0
    %788 = vmatprep.subr.mxu0 0.0
    %789 = vmatpush1.msra.mxu0 0.0
    %790 = vmatprep.subr.mxu0 0.0
    %791 = vmatpush1.msra.mxu0 0.0
    %792 = vmatprep.subr.mxu0 0.0
    %793 = vmatpush1.msra.mxu0 0.0
    %794 = vmatprep.subr.mxu0 0.0
    %795 = vmatpush1.msra.mxu0 0.0
    %796 = vmatprep.subr.mxu0 0.0
    %797 = vmatpush1.msra.mxu0 0.0
    %798 = vmatprep.subr.mxu0 0.0
    %799 = vmatpush1.msra.mxu0 0.0
    %800 = vmatprep.subr.mxu0 0.0
    %801 = vmatpush1.msra.mxu0 0.0
    %802 = vmatprep.subr.mxu0 0.0
    %803 = vmatpush1.msra.mxu0 0.0
    %804 = vmatprep.mubr.f32.mxu0 0.0
    %805 = vmatmul.mubr.f32.gmra.mrb[0].mxu0 %v735
    %v806 = vpop.f32.mrb[0].mxu0
    %v807 = vadd.f32 %v733, %v806
    %v808 = vpop.f32.mrb[0].mxu0
    %809 = vmatprep.mubr.f32.mxu0 0.0
    %810 = vmatmul.mubr.f32.gmra.mrb[0].mxu0 %v738
    %v811 = vpop.f32.mrb[0].mxu0
    %v812 = vadd.f32 %v733, %v811
    %v813 = vpop.f32.mrb[0].mxu0
    %814 = vdwg.mxu0
    %v815 = vadd.f32 %v198, %v807
    %v816 = vadd.f32 %v199, %v812
    %v817 = vld [vmem:[#allocation2 + $0x5] sm:$0x1]
    %v818 = vld [vmem:[#allocation2 + $0x6] sm:$0x1]
    %v819 = vsel %vm160, %v815, 0.0
    %820 = vadd.xlane.f32.xlu0 %v819
    %v821 = vpop.xlane.xlu0 %820
    %v822 = vsel %vm160, %v816, 0.0
    %823 = vadd.xlane.f32.xlu0 %v822
    %v824 = vpop.xlane.xlu0 %823
    %v825 = vmul.f32 %v821, %v167
    %v826 = vmul.f32 %v824, %v167
    %v827 = vsub.f32 %v815, %v825
    %v828 = vsub.f32 %v816, %v826
    %v829 = vmul.f32 %v827, %v827
    %v830 = vmul.f32 %v828, %v828
    %v831 = vsel %vm160, %v829, 0.0
    %832 = vadd.xlane.f32.xlu0 %v831
    %v833 = vpop.xlane.xlu0 %832
    %v834 = vsel %vm160, %v830, 0.0
    %835 = vadd.xlane.f32.xlu0 %v834
    %v836 = vpop.xlane.xlu0 %835
    %v837 = vmul.f32 %v833, %v167
    %v838 = vmul.f32 %v836, %v167
    %v839 = vadd.f32 %v837, 1e-12
    %v840 = vadd.f32 %v838, 1e-12
    %v841 = vrsqrt.pop %v839
    %v842 = vrsqrt.pop %v840
    %v843 = vmul.f32 %v827, %v841
    %v844 = vmul.f32 %v828, %v842
    %v845 = vlaneseq
    %v846 = vshrl.u32 %v845, 7
    %v847 = vsub.s32 0, %v846
    %v848 = vrot.slane %v817, %v847
    %v849 = vmul.f32 %v843, %v848
    %v850 = vmul.f32 %v844, %v848
    %v851 = vlaneseq
    %v852 = vshrl.u32 %v851, 7
    %v853 = vsub.s32 0, %v852
    %v854 = vrot.slane %v818, %v853
    %v855 = vadd.f32 %v849, %v854
    %v856 = vadd.f32 %v850, %v854
    %v857 = vld [vmem:[%s6] sm:$0xff]
    %v858 = vld [vmem:[%s6 + $0x8] sm:$0xff]
    %v859 = vld [vmem:[%s6 + $0x10] sm:$0xff]
    %v860 = vld [vmem:[%s6 + $0x18] sm:$0xff]
    %v861 = vld [vmem:[#allocation2 + $0x7] sm:$0x1]
    %v862 = vlaneseq
    %v863 = vshrl.u32 %v862, 7
    %v864 = vsub.s32 0, %v863
    %v865 = vrot.slane %v861, %v864
    %v867 = vsel %vm160, %v855, 0
    %v870 = vsel %vm160, %v856, 0
    %872 = vmatprep.subr.mxu0 0.0
    %873 = vmatpush1.msra.mxu0 %v857
    %874 = vmatprep.subr.mxu0 0.0
    %875 = vmatpush1.msra.mxu0 %v858
    %876 = vmatprep.subr.mxu0 0.0
    %877 = vmatpush1.msra.mxu0 %v859
    %878 = vmatprep.subr.mxu0 0.0
    %879 = vmatpush1.msra.mxu0 %v860
    %880 = vmatprep.subr.mxu0 0.0
    %881 = vmatpush1.msra.mxu0 0.0
    %882 = vmatprep.subr.mxu0 0.0
    %883 = vmatpush1.msra.mxu0 0.0
    %884 = vmatprep.subr.mxu0 0.0
    %885 = vmatpush1.msra.mxu0 0.0
    %886 = vmatprep.subr.mxu0 0.0
    %887 = vmatpush1.msra.mxu0 0.0
    %888 = vmatprep.subr.mxu0 0.0
    %889 = vmatpush1.msra.mxu0 0.0
    %890 = vmatprep.subr.mxu0 0.0
    %891 = vmatpush1.msra.mxu0 0.0
    %892 = vmatprep.subr.mxu0 0.0
    %893 = vmatpush1.msra.mxu0 0.0
    %894 = vmatprep.subr.mxu0 0.0
    %895 = vmatpush1.msra.mxu0 0.0
    %896 = vmatprep.subr.mxu0 0.0
    %897 = vmatpush1.msra.mxu0 0.0
    %898 = vmatprep.subr.mxu0 0.0
    %899 = vmatpush1.msra.mxu0 0.0
    %900 = vmatprep.subr.mxu0 0.0
    %901 = vmatpush1.msra.mxu0 0.0
    %902 = vmatprep.subr.mxu0 0.0
    %903 = vmatpush1.msra.mxu0 0.0
    %904 = vmatprep.subr.mxu0 0.0
    %905 = vmatpush1.msra.mxu0 0.0
    %906 = vmatprep.subr.mxu0 0.0
    %907 = vmatpush1.msra.mxu0 0.0
    %908 = vmatprep.subr.mxu0 0.0
    %909 = vmatpush1.msra.mxu0 0.0
    %910 = vmatprep.subr.mxu0 0.0
    %911 = vmatpush1.msra.mxu0 0.0
    %912 = vmatprep.subr.mxu0 0.0
    %913 = vmatpush1.msra.mxu0 0.0
    %914 = vmatprep.subr.mxu0 0.0
    %915 = vmatpush1.msra.mxu0 0.0
    %916 = vmatprep.subr.mxu0 0.0
    %917 = vmatpush1.msra.mxu0 0.0
    %918 = vmatprep.subr.mxu0 0.0
    %919 = vmatpush1.msra.mxu0 0.0
    %920 = vmatprep.subr.mxu0 0.0
    %921 = vmatpush1.msra.mxu0 0.0
    %922 = vmatprep.subr.mxu0 0.0
    %923 = vmatpush1.msra.mxu0 0.0
    %924 = vmatprep.subr.mxu0 0.0
    %925 = vmatpush1.msra.mxu0 0.0
    %926 = vmatprep.subr.mxu0 0.0
    %927 = vmatpush1.msra.mxu0 0.0
    %928 = vmatprep.subr.mxu0 0.0
    %929 = vmatpush1.msra.mxu0 0.0
    %930 = vmatprep.subr.mxu0 0.0
    %931 = vmatpush1.msra.mxu0 0.0
    %932 = vmatprep.subr.mxu0 0.0
    %933 = vmatpush1.msra.mxu0 0.0
    %934 = vmatprep.subr.mxu0 0.0
    %935 = vmatpush1.msra.mxu0 0.0
    %936 = vmatprep.mubr.f32.mxu0 0.0
    %937 = vmatmul.mubr.f32.gmra.mrb[0].mxu0 %v867
    %v938 = vpop.f32.mrb[0].mxu0
    %v939 = vadd.f32 %v865, %v938
    %v940 = vpop.f32.mrb[0].mxu0
    %941 = vmatprep.mubr.f32.mxu0 0.0
    %942 = vmatmul.mubr.f32.gmra.mrb[0].mxu0 %v870
    %v943 = vpop.f32.mrb[0].mxu0
    %v944 = vadd.f32 %v865, %v943
    %v945 = vpop.f32.mrb[0].mxu0
    %946 = vdwg.mxu0
    %v947 = vmul.f32 %v939, %v939
    %v948 = vmul.f32 %v944, %v944
    %v949 = vmul.f32 %v939, %v947
    %v950 = vmul.f32 %v944, %v948
    %v951 = vmul.f32 %v949, 0.044715
    %v952 = vmul.f32 %v950, 0.044715
    %v953 = vadd.f32 %v939, %v951
    %v954 = vadd.f32 %v944, %v952
    %v955 = vmul.f32 %v953, 0.7978846
    %v956 = vmul.f32 %v954, 0.7978846
    %v957 = vtanh.pop %v955
    %v958 = vtanh.pop %v956
    %v959 = vadd.f32 %v957, 1.0
    %v960 = vadd.f32 %v958, 1.0
    %v961 = vmul.f32 %v959, 0.5
    %v962 = vmul.f32 %v960, 0.5
    %v963 = vmul.f32 %v939, %v961
    %v964 = vmul.f32 %v944, %v962
    %v965 = vld [vmem:[%s7] sm:$0xff]
    %v966 = vld [vmem:[%s7 + $0x8] sm:$0xff]
    %v967 = vld [vmem:[%s7 + $0x10] sm:$0xff]
    %v968 = vld [vmem:[%s7 + $0x18] sm:$0xff]
    %v969 = vld [vmem:[%s7 + $0x20] sm:$0xff]
    %v970 = vld [vmem:[%s7 + $0x28] sm:$0xff]
    %v971 = vld [vmem:[%s7 + $0x30] sm:$0xff]
    %v972 = vld [vmem:[%s7 + $0x38] sm:$0xff]
    %v973 = vld [vmem:[#allocation2 + $0x8] sm:$0x1]
    %v974 = vlaneseq
    %v975 = vshrl.u32 %v974, 7
    %v976 = vsub.s32 0, %v975
    %v977 = vrot.slane %v973, %v976
    %v979 = vsel %vm73, %v963, 0
    %v982 = vsel %vm73, %v964, 0
    %984 = vmatprep.subr.mxu0 0.0
    %985 = vmatpush1.msra.mxu0 %v965
    %986 = vmatprep.subr.mxu0 0.0
    %987 = vmatpush1.msra.mxu0 %v966
    %988 = vmatprep.subr.mxu0 0.0
    %989 = vmatpush1.msra.mxu0 %v967
    %990 = vmatprep.subr.mxu0 0.0
    %991 = vmatpush1.msra.mxu0 %v968
    %992 = vmatprep.subr.mxu0 0.0
    %993 = vmatpush1.msra.mxu0 %v969
    %994 = vmatprep.subr.mxu0 0.0
    %995 = vmatpush1.msra.mxu0 %v970
    %996 = vmatprep.subr.mxu0 0.0
    %997 = vmatpush1.msra.mxu0 %v971
    %998 = vmatprep.subr.mxu0 0.0
    %999 = vmatpush1.msra.mxu0 %v972
    %1000 = vmatprep.subr.mxu0 0.0
    %1001 = vmatpush1.msra.mxu0 0.0
    %1002 = vmatprep.subr.mxu0 0.0
    %1003 = vmatpush1.msra.mxu0 0.0
    %1004 = vmatprep.subr.mxu0 0.0
    %1005 = vmatpush1.msra.mxu0 0.0
    %1006 = vmatprep.subr.mxu0 0.0
    %1007 = vmatpush1.msra.mxu0 0.0
    %1008 = vmatprep.subr.mxu0 0.0
    %1009 = vmatpush1.msra.mxu0 0.0
    %1010 = vmatprep.subr.mxu0 0.0
    %1011 = vmatpush1.msra.mxu0 0.0
    %1012 = vmatprep.subr.mxu0 0.0
    %1013 = vmatpush1.msra.mxu0 0.0
    %1014 = vmatprep.subr.mxu0 0.0
    %1015 = vmatpush1.msra.mxu0 0.0
    %1016 = vmatprep.subr.mxu0 0.0
    %1017 = vmatpush1.msra.mxu0 0.0
    %1018 = vmatprep.subr.mxu0 0.0
    %1019 = vmatpush1.msra.mxu0 0.0
    %1020 = vmatprep.subr.mxu0 0.0
    %1021 = vmatpush1.msra.mxu0 0.0
    %1022 = vmatprep.subr.mxu0 0.0
    %1023 = vmatpush1.msra.mxu0 0.0
    %1024 = vmatprep.subr.mxu0 0.0
    %1025 = vmatpush1.msra.mxu0 0.0
    %1026 = vmatprep.subr.mxu0 0.0
    %1027 = vmatpush1.msra.mxu0 0.0
    %1028 = vmatprep.subr.mxu0 0.0
    %1029 = vmatpush1.msra.mxu0 0.0
    %1030 = vmatprep.subr.mxu0 0.0
    %1031 = vmatpush1.msra.mxu0 0.0
    %1032 = vmatprep.subr.mxu0 0.0
    %1033 = vmatpush1.msra.mxu0 0.0
    %1034 = vmatprep.subr.mxu0 0.0
    %1035 = vmatpush1.msra.mxu0 0.0
    %1036 = vmatprep.subr.mxu0 0.0
    %1037 = vmatpush1.msra.mxu0 0.0
    %1038 = vmatprep.subr.mxu0 0.0
    %1039 = vmatpush1.msra.mxu0 0.0
    %1040 = vmatprep.subr.mxu0 0.0
    %1041 = vmatpush1.msra.mxu0 0.0
    %1042 = vmatprep.subr.mxu0 0.0
    %1043 = vmatpush1.msra.mxu0 0.0
    %1044 = vmatprep.subr.mxu0 0.0
    %1045 = vmatpush1.msra.mxu0 0.0
    %1046 = vmatprep.subr.mxu0 0.0
    %1047 = vmatpush1.msra.mxu0 0.0
    %1048 = vmatprep.mubr.f32.mxu0 0.0
    %1049 = vmatmul.mubr.f32.gmra.mrb[0].mxu0 %v979
    %v1050 = vpop.f32.mrb[0].mxu0
    %v1051 = vadd.f32 %v977, %v1050
    %v1052 = vpop.f32.mrb[0].mxu0
    %1053 = vmatprep.mubr.f32.mxu0 0.0
    %1054 = vmatmul.mubr.f32.gmra.mrb[0].mxu0 %v982
    %v1055 = vpop.f32.mrb[0].mxu0
    %v1056 = vadd.f32 %v977, %v1055
    %v1057 = vpop.f32.mrb[0].mxu0
    %1058 = vdwg.mxu0
    %v1059 = vadd.f32 %v855, %v1051
    %v1060 = vadd.f32 %v856, %v1056
    %v1061 = vld [vmem:[#allocation2 + $0x9] sm:$0x1]
    %v1062 = vld [vmem:[#allocation2 + $0xa] sm:$0x1]
    %v1063 = vsel %vm160, %v1059, 0.0
    %1064 = vadd.xlane.f32.xlu0 %v1063
    %v1065 = vpop.xlane.xlu0 %1064
    %v1066 = vsel %vm160, %v1060, 0.0
    %1067 = vadd.xlane.f32.xlu0 %v1066
    %v1068 = vpop.xlane.xlu0 %1067
    %v1069 = vmul.f32 %v1065, %v167
    %v1070 = vmul.f32 %v1068, %v167
    %v1071 = vsub.f32 %v1059, %v1069
    %v1072 = vsub.f32 %v1060, %v1070
    %v1073 = vmul.f32 %v1071, %v1071
    %v1074 = vmul.f32 %v1072, %v1072
    %v1075 = vsel %vm160, %v1073, 0.0
    %1076 = vadd.xlane.f32.xlu0 %v1075
    %v1077 = vpop.xlane.xlu0 %1076
    %v1078 = vsel %vm160, %v1074, 0.0
    %1079 = vadd.xlane.f32.xlu0 %v1078
    %v1080 = vpop.xlane.xlu0 %1079
    %v1081 = vmul.f32 %v1077, %v167
    %v1082 = vmul.f32 %v1080, %v167
    %v1083 = vadd.f32 %v1081, 1e-12
    %v1084 = vadd.f32 %v1082, 1e-12
    %v1085 = vrsqrt.pop %v1083
    %v1086 = vrsqrt.pop %v1084
    %v1087 = vmul.f32 %v1071, %v1085
    %v1088 = vmul.f32 %v1072, %v1086
    %v1089 = vlaneseq
    %v1090 = vshrl.u32 %v1089, 7
    %v1091 = vsub.s32 0, %v1090
    %v1092 = vrot.slane %v1061, %v1091
    %v1093 = vmul.f32 %v1087, %v1092
    %v1094 = vmul.f32 %v1088, %v1092
    %v1095 = vlaneseq
    %v1096 = vshrl.u32 %v1095, 7
    %v1097 = vsub.s32 0, %v1096
    %v1098 = vrot.slane %v1062, %v1097
    %v1099 = vadd.f32 %v1093, %v1098
    %v1100 = vadd.f32 %v1094, %v1098
    %s1101 = scalar_lea.vmem %s4, 32
    %v1102 = vld [vmem:[%s1101] sm:$0xff]
    %v1103 = vld [vmem:[%s1101 + $0x8] sm:$0xff]
    %v1104 = vld [vmem:[%s1101 + $0x10] sm:$0xff]
    %v1105 = vld [vmem:[%s1101 + $0x18] sm:$0xff]
    %v1106 = vld [vmem:[#allocation2 + $0xb] sm:$0x1]
    %v1107 = vlaneseq
    %v1108 = vshrl.u32 %v1107, 7
    %v1109 = vsub.s32 0, %v1108
    %v1110 = vrot.slane %v1106, %v1109
    %v1112 = vsel %vm160, %v1099, 0
    %v1115 = vsel %vm160, %v1100, 0
    %1117 = vmatprep.subr.mxu0 0.0
    %1118 = vmatpush1.msra.mxu0 %v1102
    %1119 = vmatprep.subr.mxu0 0.0
    %1120 = vmatpush1.msra.mxu0 %v1103
    %1121 = vmatprep.subr.mxu0 0.0
    %1122 = vmatpush1.msra.mxu0 %v1104
    %1123 = vmatprep.subr.mxu0 0.0
    %1124 = vmatpush1.msra.mxu0 %v1105
    %1125 = vmatprep.subr.mxu0 0.0
    %1126 = vmatpush1.msra.mxu0 0.0
    %1127 = vmatprep.subr.mxu0 0.0
    %1128 = vmatpush1.msra.mxu0 0.0
    %1129 = vmatprep.subr.mxu0 0.0
    %1130 = vmatpush1.msra.mxu0 0.0
    %1131 = vmatprep.subr.mxu0 0.0
    %1132 = vmatpush1.msra.mxu0 0.0
    %1133 = vmatprep.subr.mxu0 0.0
    %1134 = vmatpush1.msra.mxu0 0.0
    %1135 = vmatprep.subr.mxu0 0.0
    %1136 = vmatpush1.msra.mxu0 0.0
    %1137 = vmatprep.subr.mxu0 0.0
    %1138 = vmatpush1.msra.mxu0 0.0
    %1139 = vmatprep.subr.mxu0 0.0
    %1140 = vmatpush1.msra.mxu0 0.0
    %1141 = vmatprep.subr.mxu0 0.0
    %1142 = vmatpush1.msra.mxu0 0.0
    %1143 = vmatprep.subr.mxu0 0.0
    %1144 = vmatpush1.msra.mxu0 0.0
    %1145 = vmatprep.subr.mxu0 0.0
    %1146 = vmatpush1.msra.mxu0 0.0
    %1147 = vmatprep.subr.mxu0 0.0
    %1148 = vmatpush1.msra.mxu0 0.0
    %1149 = vmatprep.subr.mxu0 0.0
    %1150 = vmatpush1.msra.mxu0 0.0
    %1151 = vmatprep.subr.mxu0 0.0
    %1152 = vmatpush1.msra.mxu0 0.0
    %1153 = vmatprep.subr.mxu0 0.0
    %1154 = vmatpush1.msra.mxu0 0.0
    %1155 = vmatprep.subr.mxu0 0.0
    %1156 = vmatpush1.msra.mxu0 0.0
    %1157 = vmatprep.subr.mxu0 0.0
    %1158 = vmatpush1.msra.mxu0 0.0
    %1159 = vmatprep.subr.mxu0 0.0
    %1160 = vmatpush1.msra.mxu0 0.0
    %1161 = vmatprep.subr.mxu0 0.0
    %1162 = vmatpush1.msra.mxu0 0.0
    %1163 = vmatprep.subr.mxu0 0.0
    %1164 = vmatpush1.msra.mxu0 0.0
    %1165 = vmatprep.subr.mxu0 0.0
    %1166 = vmatpush1.msra.mxu0 0.0
    %1167 = vmatprep.subr.mxu0 0.0
    %1168 = vmatpush1.msra.mxu0 0.0
    %1169 = vmatprep.subr.mxu0 0.0
    %1170 = vmatpush1.msra.mxu0 0.0
    %1171 = vmatprep.subr.mxu0 0.0
    %1172 = vmatpush1.msra.mxu0 0.0
    %1173 = vmatprep.subr.mxu0 0.0
    %1174 = vmatpush1.msra.mxu0 0.0
    %1175 = vmatprep.subr.mxu0 0.0
    %1176 = vmatpush1.msra.mxu0 0.0
    %1177 = vmatprep.subr.mxu0 0.0
    %1178 = vmatpush1.msra.mxu0 0.0
    %1179 = vmatprep.subr.mxu0 0.0
    %1180 = vmatpush1.msra.mxu0 0.0
    %1181 = vmatprep.mubr.f32.mxu0 0.0
    %1182 = vmatmul.mubr.f32.gmra.mrb[0].mxu0 %v1112
    %v1183 = vpop.f32.mrb[0].mxu0
    %v1184 = vadd.f32 %v1110, %v1183
    %v1185 = vpop.f32.mrb[0].mxu0
    %1186 = vmatprep.mubr.f32.mxu0 0.0
    %1187 = vmatmul.mubr.f32.gmra.mrb[0].mxu0 %v1115
    %v1188 = vpop.f32.mrb[0].mxu0
    %v1189 = vadd.f32 %v1110, %v1188
    %v1190 = vpop.f32.mrb[0].mxu0
    %1191 = vdwg.mxu0
    %1194 = vrot.lane.b32.xlu0 %v1184, 96
    %v1195 = vpop.permute.xlu0 %1194
    %1196 = vrot.lane.b32.xlu0 %v1189, 96
    %v1197 = vpop.permute.xlu0 %1196
    %v1198 = vsel %vm322, %v1184, 0
    %v1200 = vsel %vm322, %v1189, 0
    %v1202 = vsel %vm322, %v1195, 0
    %v1204 = vsel %vm322, %v1197, 0
    %1206 = vmatprep.subr.mxu0 0.0
    %1207 = vmatpush1.xpose.msra.mxu0 %v1202
    %1208 = vmatprep.subr.mxu0 0.0
    %1209 = vmatpush1.xpose.msra.mxu0 %v1204
    %1210 = vmatprep.subr.mxu0 0.0
    %1211 = vmatpush1.xpose.msra.mxu0 0.0
    %1212 = vmatprep.subr.mxu0 0.0
    %1213 = vmatpush1.xpose.msra.mxu0 0.0
    %1214 = vmatprep.subr.mxu0 0.0
    %1215 = vmatpush1.xpose.msra.mxu0 0.0
    %1216 = vmatprep.subr.mxu0 0.0
    %1217 = vmatpush1.xpose.msra.mxu0 0.0
    %1218 = vmatprep.subr.mxu0 0.0
    %1219 = vmatpush1.xpose.msra.mxu0 0.0
    %1220 = vmatprep.subr.mxu0 0.0
    %1221 = vmatpush1.xpose.msra.mxu0 0.0
    %1222 = vmatprep.subr.mxu0 0.0
    %1223 = vmatpush1.xpose.msra.mxu0 0.0
    %1224 = vmatprep.subr.mxu0 0.0
    %1225 = vmatpush1.xpose.msra.mxu0 0.0
    %1226 = vmatprep.subr.mxu0 0.0
    %1227 = vmatpush1.xpose.msra.mxu0 0.0
    %1228 = vmatprep.subr.mxu0 0.0
    %1229 = vmatpush1.xpose.msra.mxu0 0.0
    %1230 = vmatprep.subr.mxu0 0.0
    %1231 = vmatpush1.xpose.msra.mxu0 0.0
    %1232 = vmatprep.subr.mxu0 0.0
    %1233 = vmatpush1.xpose.msra.mxu0 0.0
    %1234 = vmatprep.subr.mxu0 0.0
    %1235 = vmatpush1.xpose.msra.mxu0 0.0
    %1236 = vmatprep.subr.mxu0 0.0
    %1237 = vmatpush1.xpose.msra.mxu0 0.0
    %1238 = vmatprep.subr.mxu0 0.0
    %1239 = vmatpush1.xpose.msra.mxu0 0.0
    %1240 = vmatprep.subr.mxu0 0.0
    %1241 = vmatpush1.xpose.msra.mxu0 0.0
    %1242 = vmatprep.subr.mxu0 0.0
    %1243 = vmatpush1.xpose.msra.mxu0 0.0
    %1244 = vmatprep.subr.mxu0 0.0
    %1245 = vmatpush1.xpose.msra.mxu0 0.0
    %1246 = vmatprep.subr.mxu0 0.0
    %1247 = vmatpush1.xpose.msra.mxu0 0.0
    %1248 = vmatprep.subr.mxu0 0.0
    %1249 = vmatpush1.xpose.msra.mxu0 0.0
    %1250 = vmatprep.subr.mxu0 0.0
    %1251 = vmatpush1.xpose.msra.mxu0 0.0
    %1252 = vmatprep.subr.mxu0 0.0
    %1253 = vmatpush1.xpose.msra.mxu0 0.0
    %1254 = vmatprep.subr.mxu0 0.0
    %1255 = vmatpush1.xpose.msra.mxu0 0.0
    %1256 = vmatprep.subr.mxu0 0.0
    %1257 = vmatpush1.xpose.msra.mxu0 0.0
    %1258 = vmatprep.subr.mxu0 0.0
    %1259 = vmatpush1.xpose.msra.mxu0 0.0
    %1260 = vmatprep.subr.mxu0 0.0
    %1261 = vmatpush1.xpose.msra.mxu0 0.0
    %1262 = vmatprep.subr.mxu0 0.0
    %1263 = vmatpush1.xpose.msra.mxu0 0.0
    %1264 = vmatprep.subr.mxu0 0.0
    %1265 = vmatpush1.xpose.msra.mxu0 0.0
    %1266 = vmatprep.subr.mxu0 0.0
    %1267 = vmatpush1.xpose.msra.mxu0 0.0
    %1268 = vmatprep.subr.mxu0 0.0
    %1269 = vmatpush1.xpose.msra.mxu0 0.0
    %1270 = vmatprep.mubr.f32.mxu0 0.0
    %1271 = vmatmul.mubr.f32.gmra.mrb[0].mxu0 %v1198
    %v1272 = vpop.f32.mrb[0].mxu0
    %v1273 = vadd.f32 %v224, %v1272
    %v1274 = vpop.f32.mrb[0].mxu0
    %1275 = vmatprep.mubr.f32.mxu0 0.0
    %1276 = vmatmul.mubr.f32.gmra.mrb[0].mxu0 %v1200
    %v1277 = vpop.f32.mrb[0].mxu0
    %v1278 = vadd.f32 %v225, %v1277
    %v1279 = vpop.f32.mrb[0].mxu0
    %1280 = vdwg.mxu0
    %v1281 = vsel %vm322, %v1273, -inf
    %1282 = vmax.xlane.f32.xlu0 %v1281
    %v1283 = vpop.xlane.xlu0 %1282
    %v1284 = vsel %vm322, %v1278, -inf
    %1285 = vmax.xlane.f32.xlu0 %v1284
    %v1286 = vpop.xlane.xlu0 %1285
    %v1287 = vsub.f32 %v1273, %v1283
    %v1288 = vsub.f32 %v1278, %v1286
    %v1289 = vmul.f32 %v1287, 1.442695
    %v1290 = vpow.pop %v1289
    %v1291 = vmul.f32 %v1288, 1.442695
    %v1292 = vpow.pop %v1291
    %v1293 = vsel %vm322, %v1290, 0.0
    %1294 = vadd.xlane.f32.xlu0 %v1293
    %v1295 = vpop.xlane.xlu0 %1294
    %v1296 = vsel %vm322, %v1292, 0.0
    %1297 = vadd.xlane.f32.xlu0 %v1296
    %v1298 = vpop.xlane.xlu0 %1297
    %v1299 = vrcp.pop %v1295
    %v1300 = vrcp.pop %v1298
    %v1301 = vmul.f32 %v1290, %v1299
    %v1302 = vmul.f32 %v1292, %v1300
    %1303 = vrot.lane.b32.xlu0 %v1184, 64
    %v1304 = vpop.permute.xlu0 %1303
    %1305 = vrot.lane.b32.xlu0 %v1189, 64
    %v1306 = vpop.permute.xlu0 %1305
    %v1310 = vsel %vm322, %v1301, 0
    %v1313 = vsel %vm322, %v1302, 0
    %1315 = vmatprep.subr.mxu0 0.0
    %1316 = vmatpush1.msra.mxu0 %v1304
    %1317 = vmatprep.subr.mxu0 0.0
    %1318 = vmatpush1.msra.mxu0 %v1306
    %1319 = vmatprep.subr.mxu0 0.0
    %1320 = vmatpush1.msra.mxu0 0.0
    %1321 = vmatprep.subr.mxu0 0.0
    %1322 = vmatpush1.msra.mxu0 0.0
    %1323 = vmatprep.subr.mxu0 0.0
    %1324 = vmatpush1.msra.mxu0 0.0
    %1325 = vmatprep.subr.mxu0 0.0
    %1326 = vmatpush1.msra.mxu0 0.0
    %1327 = vmatprep.subr.mxu0 0.0
    %1328 = vmatpush1.msra.mxu0 0.0
    %1329 = vmatprep.subr.mxu0 0.0
    %1330 = vmatpush1.msra.mxu0 0.0
    %1331 = vmatprep.subr.mxu0 0.0
    %1332 = vmatpush1.msra.mxu0 0.0
    %1333 = vmatprep.subr.mxu0 0.0
    %1334 = vmatpush1.msra.mxu0 0.0
    %1335 = vmatprep.subr.mxu0 0.0
    %1336 = vmatpush1.msra.mxu0 0.0
    %1337 = vmatprep.subr.mxu0 0.0
    %1338 = vmatpush1.msra.mxu0 0.0
    %1339 = vmatprep.subr.mxu0 0.0
    %1340 = vmatpush1.msra.mxu0 0.0
    %1341 = vmatprep.subr.mxu0 0.0
    %1342 = vmatpush1.msra.mxu0 0.0
    %1343 = vmatprep.subr.mxu0 0.0
    %1344 = vmatpush1.msra.mxu0 0.0
    %1345 = vmatprep.subr.mxu0 0.0
    %1346 = vmatpush1.msra.mxu0 0.0
    %1347 = vmatprep.subr.mxu0 0.0
    %1348 = vmatpush1.msra.mxu0 0.0
    %1349 = vmatprep.subr.mxu0 0.0
    %1350 = vmatpush1.msra.mxu0 0.0
    %1351 = vmatprep.subr.mxu0 0.0
    %1352 = vmatpush1.msra.mxu0 0.0
    %1353 = vmatprep.subr.mxu0 0.0
    %1354 = vmatpush1.msra.mxu0 0.0
    %1355 = vmatprep.subr.mxu0 0.0
    %1356 = vmatpush1.msra.mxu0 0.0
    %1357 = vmatprep.subr.mxu0 0.0
    %1358 = vmatpush1.msra.mxu0 0.0
    %1359 = vmatprep.subr.mxu0 0.0
    %1360 = vmatpush1.msra.mxu0 0.0
    %1361 = vmatprep.subr.mxu0 0.0
    %1362 = vmatpush1.msra.mxu0 0.0
    %1363 = vmatprep.subr.mxu0 0.0
    %1364 = vmatpush1.msra.mxu0 0.0
    %1365 = vmatprep.subr.mxu0 0.0
    %1366 = vmatpush1.msra.mxu0 0.0
    %1367 = vmatprep.subr.mxu0 0.0
    %1368 = vmatpush1.msra.mxu0 0.0
    %1369 = vmatprep.subr.mxu0 0.0
    %1370 = vmatpush1.msra.mxu0 0.0
    %1371 = vmatprep.subr.mxu0 0.0
    %1372 = vmatpush1.msra.mxu0 0.0
    %1373 = vmatprep.subr.mxu0 0.0
    %1374 = vmatpush1.msra.mxu0 0.0
    %1375 = vmatprep.subr.mxu0 0.0
    %1376 = vmatpush1.msra.mxu0 0.0
    %1377 = vmatprep.subr.mxu0 0.0
    %1378 = vmatpush1.msra.mxu0 0.0
    %1379 = vmatprep.mubr.f32.mxu0 0.0
    %1380 = vmatmul.mubr.f32.gmra.mrb[0].mxu0 %v1310
    %v1381 = vpop.f32.mrb[0].mxu0
    %v1382 = vadd.f32 0.0, %v1381
    %v1383 = vpop.f32.mrb[0].mxu0
    %1384 = vmatprep.mubr.f32.mxu0 0.0
    %1385 = vmatmul.mubr.f32.gmra.mrb[0].mxu0 %v1313
    %v1386 = vpop.f32.mrb[0].mxu0
    %v1387 = vadd.f32 0.0, %v1386
    %v1388 = vpop.f32.mrb[0].mxu0
    %1389 = vdwg.mxu0
    %1390 = vrot.lane.b32.xlu0 %v1184, 112
    %v1391 = vpop.permute.xlu0 %1390
    %1392 = vrot.lane.b32.xlu0 %v1189, 112
    %v1393 = vpop.permute.xlu0 %1392
    %1394 = vrot.lane.b32.xlu0 %v1184, 80
    %v1395 = vpop.permute.xlu0 %1394
    %1396 = vrot.lane.b32.xlu0 %v1189, 80
    %v1397 = vpop.permute.xlu0 %1396
    %v1398 = vsel %vm322, %v1391, 0
    %v1400 = vsel %vm322, %v1393, 0
    %v1402 = vsel %vm322, %v1395, 0
    %v1404 = vsel %vm322, %v1397, 0
    %1406 = vmatprep.subr.mxu0 0.0
    %1407 = vmatpush1.xpose.msra.mxu0 %v1402
    %1408 = vmatprep.subr.mxu0 0.0
    %1409 = vmatpush1.xpose.msra.mxu0 %v1404
    %1410 = vmatprep.subr.mxu0 0.0
    %1411 = vmatpush1.xpose.msra.mxu0 0.0
    %1412 = vmatprep.subr.mxu0 0.0
    %1413 = vmatpush1.xpose.msra.mxu0 0.0
    %1414 = vmatprep.subr.mxu0 0.0
    %1415 = vmatpush1.xpose.msra.mxu0 0.0
    %1416 = vmatprep.subr.mxu0 0.0
    %1417 = vmatpush1.xpose.msra.mxu0 0.0
    %1418 = vmatprep.subr.mxu0 0.0
    %1419 = vmatpush1.xpose.msra.mxu0 0.0
    %1420 = vmatprep.subr.mxu0 0.0
    %1421 = vmatpush1.xpose.msra.mxu0 0.0
    %1422 = vmatprep.subr.mxu0 0.0
    %1423 = vmatpush1.xpose.msra.mxu0 0.0
    %1424 = vmatprep.subr.mxu0 0.0
    %1425 = vmatpush1.xpose.msra.mxu0 0.0
    %1426 = vmatprep.subr.mxu0 0.0
    %1427 = vmatpush1.xpose.msra.mxu0 0.0
    %1428 = vmatprep.subr.mxu0 0.0
    %1429 = vmatpush1.xpose.msra.mxu0 0.0
    %1430 = vmatprep.subr.mxu0 0.0
    %1431 = vmatpush1.xpose.msra.mxu0 0.0
    %1432 = vmatprep.subr.mxu0 0.0
    %1433 = vmatpush1.xpose.msra.mxu0 0.0
    %1434 = vmatprep.subr.mxu0 0.0
    %1435 = vmatpush1.xpose.msra.mxu0 0.0
    %1436 = vmatprep.subr.mxu0 0.0
    %1437 = vmatpush1.xpose.msra.mxu0 0.0
    %1438 = vmatprep.subr.mxu0 0.0
    %1439 = vmatpush1.xpose.msra.mxu0 0.0
    %1440 = vmatprep.subr.mxu0 0.0
    %1441 = vmatpush1.xpose.msra.mxu0 0.0
    %1442 = vmatprep.subr.mxu0 0.0
    %1443 = vmatpush1.xpose.msra.mxu0 0.0
    %1444 = vmatprep.subr.mxu0 0.0
    %1445 = vmatpush1.xpose.msra.mxu0 0.0
    %1446 = vmatprep.subr.mxu0 0.0
    %1447 = vmatpush1.xpose.msra.mxu0 0.0
    %1448 = vmatprep.subr.mxu0 0.0
    %1449 = vmatpush1.xpose.msra.mxu0 0.0
    %1450 = vmatprep.subr.mxu0 0.0
    %1451 = vmatpush1.xpose.msra.mxu0 0.0
    %1452 = vmatprep.subr.mxu0 0.0
    %1453 = vmatpush1.xpose.msra.mxu0 0.0
    %1454 = vmatprep.subr.mxu0 0.0
    %1455 = vmatpush1.xpose.msra.mxu0 0.0
    %1456 = vmatprep.subr.mxu0 0.0
    %1457 = vmatpush1.xpose.msra.mxu0 0.0
    %1458 = vmatprep.subr.mxu0 0.0
    %1459 = vmatpush1.xpose.msra.mxu0 0.0
    %1460 = vmatprep.subr.mxu0 0.0
    %1461 = vmatpush1.xpose.msra.mxu0 0.0
    %1462 = vmatprep.subr.mxu0 0.0
    %1463 = vmatpush1.xpose.msra.mxu0 0.0
    %1464 = vmatprep.subr.mxu0 0.0
    %1465 = vmatpush1.xpose.msra.mxu0 0.0
    %1466 = vmatprep.subr.mxu0 0.0
    %1467 = vmatpush1.xpose.msra.mxu0 0.0
    %1468 = vmatprep.subr.mxu0 0.0
    %1469 = vmatpush1.xpose.msra.mxu0 0.0
    %1470 = vmatprep.mubr.f32.mxu0 0.0
    %1471 = vmatmul.mubr.f32.gmra.mrb[0].mxu0 %v1398
    %v1472 = vpop.f32.mrb[0].mxu0
    %v1473 = vadd.f32 %v224, %v1472
    %v1474 = vpop.f32.mrb[0].mxu0
    %1475 = vmatprep.mubr.f32.mxu0 0.0
    %1476 = vmatmul.mubr.f32.gmra.mrb[0].mxu0 %v1400
    %v1477 = vpop.f32.mrb[0].mxu0
    %v1478 = vadd.f32 %v225, %v1477
    %v1479 = vpop.f32.mrb[0].mxu0
    %1480 = vdwg.mxu0
    %v1481 = vsel %vm322, %v1473, -inf
    %1482 = vmax.xlane.f32.xlu0 %v1481
    %v1483 = vpop.xlane.xlu0 %1482
    %v1484 = vsel %vm322, %v1478, -inf
    %1485 = vmax.xlane.f32.xlu0 %v1484
    %v1486 = vpop.xlane.xlu0 %1485
    %v1487 = vsub.f32 %v1473, %v1483
    %v1488 = vsub.f32 %v1478, %v1486
    %v1489 = vmul.f32 %v1487, 1.442695
    %v1490 = vpow.pop %v1489
    %v1491 = vmul.f32 %v1488, 1.442695
    %v1492 = vpow.pop %v1491
    %v1493 = vsel %vm322, %v1490, 0.0
    %1494 = vadd.xlane.f32.xlu0 %v1493
    %v1495 = vpop.xlane.xlu0 %1494
    %v1496 = vsel %vm322, %v1492, 0.0
    %1497 = vadd.xlane.f32.xlu0 %v1496
    %v1498 = vpop.xlane.xlu0 %1497
    %v1499 = vrcp.pop %v1495
    %v1500 = vrcp.pop %v1498
    %v1501 = vmul.f32 %v1490, %v1499
    %v1502 = vmul.f32 %v1492, %v1500
    %1503 = vrot.lane.b32.xlu0 %v1184, 48
    %v1504 = vpop.permute.xlu0 %1503
    %1505 = vrot.lane.b32.xlu0 %v1189, 48
    %v1506 = vpop.permute.xlu0 %1505
    %v1510 = vsel %vm322, %v1501, 0
    %v1513 = vsel %vm322, %v1502, 0
    %1515 = vmatprep.subr.mxu0 0.0
    %1516 = vmatpush1.msra.mxu0 %v1504
    %1517 = vmatprep.subr.mxu0 0.0
    %1518 = vmatpush1.msra.mxu0 %v1506
    %1519 = vmatprep.subr.mxu0 0.0
    %1520 = vmatpush1.msra.mxu0 0.0
    %1521 = vmatprep.subr.mxu0 0.0
    %1522 = vmatpush1.msra.mxu0 0.0
    %1523 = vmatprep.subr.mxu0 0.0
    %1524 = vmatpush1.msra.mxu0 0.0
    %1525 = vmatprep.subr.mxu0 0.0
    %1526 = vmatpush1.msra.mxu0 0.0
    %1527 = vmatprep.subr.mxu0 0.0
    %1528 = vmatpush1.msra.mxu0 0.0
    %1529 = vmatprep.subr.mxu0 0.0
    %1530 = vmatpush1.msra.mxu0 0.0
    %1531 = vmatprep.subr.mxu0 0.0
    %1532 = vmatpush1.msra.mxu0 0.0
    %1533 = vmatprep.subr.mxu0 0.0
    %1534 = vmatpush1.msra.mxu0 0.0
    %1535 = vmatprep.subr.mxu0 0.0
    %1536 = vmatpush1.msra.mxu0 0.0
    %1537 = vmatprep.subr.mxu0 0.0
    %1538 = vmatpush1.msra.mxu0 0.0
    %1539 = vmatprep.subr.mxu0 0.0
    %1540 = vmatpush1.msra.mxu0 0.0
    %1541 = vmatprep.subr.mxu0 0.0
    %1542 = vmatpush1.msra.mxu0 0.0
    %1543 = vmatprep.subr.mxu0 0.0
    %1544 = vmatpush1.msra.mxu0 0.0
    %1545 = vmatprep.subr.mxu0 0.0
    %1546 = vmatpush1.msra.mxu0 0.0
    %1547 = vmatprep.subr.mxu0 0.0
    %1548 = vmatpush1.msra.mxu0 0.0
    %1549 = vmatprep.subr.mxu0 0.0
    %1550 = vmatpush1.msra.mxu0 0.0
    %1551 = vmatprep.subr.mxu0 0.0
    %1552 = vmatpush1.msra.mxu0 0.0
    %1553 = vmatprep.subr.mxu0 0.0
    %1554 = vmatpush1.msra.mxu0 0.0
    %1555 = vmatprep.subr.mxu0 0.0
    %1556 = vmatpush1.msra.mxu0 0.0
    %1557 = vmatprep.subr.mxu0 0.0
    %1558 = vmatpush1.msra.mxu0 0.0
    %1559 = vmatprep.subr.mxu0 0.0
    %1560 = vmatpush1.msra.mxu0 0.0
    %1561 = vmatprep.subr.mxu0 0.0
    %1562 = vmatpush1.msra.mxu0 0.0
    %1563 = vmatprep.subr.mxu0 0.0
    %1564 = vmatpush1.msra.mxu0 0.0
    %1565 = vmatprep.subr.mxu0 0.0
    %1566 = vmatpush1.msra.mxu0 0.0
    %1567 = vmatprep.subr.mxu0 0.0
    %1568 = vmatpush1.msra.mxu0 0.0
    %1569 = vmatprep.subr.mxu0 0.0
    %1570 = vmatpush1.msra.mxu0 0.0
    %1571 = vmatprep.subr.mxu0 0.0
    %1572 = vmatpush1.msra.mxu0 0.0
    %1573 = vmatprep.subr.mxu0 0.0
    %1574 = vmatpush1.msra.mxu0 0.0
    %1575 = vmatprep.subr.mxu0 0.0
    %1576 = vmatpush1.msra.mxu0 0.0
    %1577 = vmatprep.subr.mxu0 0.0
    %1578 = vmatpush1.msra.mxu0 0.0
    %1579 = vmatprep.mubr.f32.mxu0 0.0
    %1580 = vmatmul.mubr.f32.gmra.mrb[0].mxu0 %v1510
    %v1581 = vpop.f32.mrb[0].mxu0
    %v1582 = vadd.f32 0.0, %v1581
    %v1583 = vpop.f32.mrb[0].mxu0
    %1584 = vmatprep.mubr.f32.mxu0 0.0
    %1585 = vmatmul.mubr.f32.gmra.mrb[0].mxu0 %v1513
    %v1586 = vpop.f32.mrb[0].mxu0
    %v1587 = vadd.f32 0.0, %v1586
    %v1588 = vpop.f32.mrb[0].mxu0
    %1589 = vdwg.mxu0
    %1592 = vrot.lane.b32.xlu0 %v1582, 16
    %v1593 = vpop.permute.xlu0 %1592
    %1594 = vrot.lane.b32.xlu0 %v1587, 16
    %v1595 = vpop.permute.xlu0 %1594
    %v1598 = vsel %vm322, %v1382, %v1593
    %v1599 = vsel %vm322, %v1387, %v1595
    %s1600 = scalar_lea.vmem %s5, 32
    %v1601 = vld [vmem:[%s1600] sm:$0xff]
    %v1602 = vld [vmem:[%s1600 + $0x8] sm:$0xff]
    %v1603 = vld [vmem:[%s1600 + $0x10] sm:$0xff]
    %v1604 = vld [vmem:[%s1600 + $0x18] sm:$0xff]
    %v1605 = vld [vmem:[#allocation2 + $0xc] sm:$0x1]
    %v1606 = vlaneseq
    %v1607 = vshrl.u32 %v1606, 7
    %v1608 = vsub.s32 0, %v1607
    %v1609 = vrot.slane %v1605, %v1608
    %v1611 = vsel %vm160, %v1598, 0
    %v1614 = vsel %vm160, %v1599, 0
    %1616 = vmatprep.subr.mxu0 0.0
    %1617 = vmatpush1.msra.mxu0 %v1601
    %1618 = vmatprep.subr.mxu0 0.0
    %1619 = vmatpush1.msra.mxu0 %v1602
    %1620 = vmatprep.subr.mxu0 0.0
    %1621 = vmatpush1.msra.mxu0 %v1603
    %1622 = vmatprep.subr.mxu0 0.0
    %1623 = vmatpush1.msra.mxu0 %v1604
    %1624 = vmatprep.subr.mxu0 0.0
    %1625 = vmatpush1.msra.mxu0 0.0
    %1626 = vmatprep.subr.mxu0 0.0
    %1627 = vmatpush1.msra.mxu0 0.0
    %1628 = vmatprep.subr.mxu0 0.0
    %1629 = vmatpush1.msra.mxu0 0.0
    %1630 = vmatprep.subr.mxu0 0.0
    %1631 = vmatpush1.msra.mxu0 0.0
    %1632 = vmatprep.subr.mxu0 0.0
    %1633 = vmatpush1.msra.mxu0 0.0
    %1634 = vmatprep.subr.mxu0 0.0
    %1635 = vmatpush1.msra.mxu0 0.0
    %1636 = vmatprep.subr.mxu0 0.0
    %1637 = vmatpush1.msra.mxu0 0.0
    %1638 = vmatprep.subr.mxu0 0.0
    %1639 = vmatpush1.msra.mxu0 0.0
    %1640 = vmatprep.subr.mxu0 0.0
    %1641 = vmatpush1.msra.mxu0 0.0
    %1642 = vmatprep.subr.mxu0 0.0
    %1643 = vmatpush1.msra.mxu0 0.0
    %1644 = vmatprep.subr.mxu0 0.0
    %1645 = vmatpush1.msra.mxu0 0.0
    %1646 = vmatprep.subr.mxu0 0.0
    %1647 = vmatpush1.msra.mxu0 0.0
    %1648 = vmatprep.subr.mxu0 0.0
    %1649 = vmatpush1.msra.mxu0 0.0
    %1650 = vmatprep.subr.mxu0 0.0
    %1651 = vmatpush1.msra.mxu0 0.0
    %1652 = vmatprep.subr.mxu0 0.0
    %1653 = vmatpush1.msra.mxu0 0.0
    %1654 = vmatprep.subr.mxu0 0.0
    %1655 = vmatpush1.msra.mxu0 0.0
    %1656 = vmatprep.subr.mxu0 0.0
    %1657 = vmatpush1.msra.mxu0 0.0
    %1658 = vmatprep.subr.mxu0 0.0
    %1659 = vmatpush1.msra.mxu0 0.0
    %1660 = vmatprep.subr.mxu0 0.0
    %1661 = vmatpush1.msra.mxu0 0.0
    %1662 = vmatprep.subr.mxu0 0.0
    %1663 = vmatpush1.msra.mxu0 0.0
    %1664 = vmatprep.subr.mxu0 0.0
    %1665 = vmatpush1.msra.mxu0 0.0
    %1666 = vmatprep.subr.mxu0 0.0
    %1667 = vmatpush1.msra.mxu0 0.0
    %1668 = vmatprep.subr.mxu0 0.0
    %1669 = vmatpush1.msra.mxu0 0.0
    %1670 = vmatprep.subr.mxu0 0.0
    %1671 = vmatpush1.msra.mxu0 0.0
    %1672 = vmatprep.subr.mxu0 0.0
    %1673 = vmatpush1.msra.mxu0 0.0
    %1674 = vmatprep.subr.mxu0 0.0
    %1675 = vmatpush1.msra.mxu0 0.0
    %1676 = vmatprep.subr.mxu0 0.0
    %1677 = vmatpush1.msra.mxu0 0.0
    %1678 = vmatprep.subr.mxu0 0.0
    %1679 = vmatpush1.msra.mxu0 0.0
    %1680 = vmatprep.mubr.f32.mxu0 0.0
    %1681 = vmatmul.mubr.f32.gmra.mrb[0].mxu0 %v1611
    %v1682 = vpop.f32.mrb[0].mxu0
    %v1683 = vadd.f32 %v1609, %v1682
    %v1684 = vpop.f32.mrb[0].mxu0
    %1685 = vmatprep.mubr.f32.mxu0 0.0
    %1686 = vmatmul.mubr.f32.gmra.mrb[0].mxu0 %v1614
    %v1687 = vpop.f32.mrb[0].mxu0
    %v1688 = vadd.f32 %v1609, %v1687
    %v1689 = vpop.f32.mrb[0].mxu0
    %1690 = vdwg.mxu0
    %v1691 = vadd.f32 %v1099, %v1683
    %v1692 = vadd.f32 %v1100, %v1688
    %v1693 = vld [vmem:[#allocation2 + $0xd] sm:$0x1]
    %v1694 = vld [vmem:[#allocation2 + $0xe] sm:$0x1]
    %v1695 = vsel %vm160, %v1691, 0.0
    %1696 = vadd.xlane.f32.xlu0 %v1695
    %v1697 = vpop.xlane.xlu0 %1696
    %v1698 = vsel %vm160, %v1692, 0.0
    %1699 = vadd.xlane.f32.xlu0 %v1698
    %v1700 = vpop.xlane.xlu0 %1699
    %v1701 = vmul.f32 %v1697, %v167
    %v1702 = vmul.f32 %v1700, %v167
    %v1703 = vsub.f32 %v1691, %v1701
    %v1704 = vsub.f32 %v1692, %v1702
    %v1705 = vmul.f32 %v1703, %v1703
    %v1706 = vmul.f32 %v1704, %v1704
    %v1707 = vsel %vm160, %v1705, 0.0
    %1708 = vadd.xlane.f32.xlu0 %v1707
    %v1709 = vpop.xlane.xlu0 %1708
    %v1710 = vsel %vm160, %v1706, 0.0
    %1711 = vadd.xlane.f32.xlu0 %v1710
    %v1712 = vpop.xlane.xlu0 %1711
    %v1713 = vmul.f32 %v1709, %v167
    %v1714 = vmul.f32 %v1712, %v167
    %v1715 = vadd.f32 %v1713, 1e-12
    %v1716 = vadd.f32 %v1714, 1e-12
    %v1717 = vrsqrt.pop %v1715
    %v1718 = vrsqrt.pop %v1716
    %v1719 = vmul.f32 %v1703, %v1717
    %v1720 = vmul.f32 %v1704, %v1718
    %v1721 = vlaneseq
    %v1722 = vshrl.u32 %v1721, 7
    %v1723 = vsub.s32 0, %v1722
    %v1724 = vrot.slane %v1693, %v1723
    %v1725 = vmul.f32 %v1719, %v1724
    %v1726 = vmul.f32 %v1720, %v1724
    %v1727 = vlaneseq
    %v1728 = vshrl.u32 %v1727, 7
    %v1729 = vsub.s32 0, %v1728
    %v1730 = vrot.slane %v1694, %v1729
    %v1731 = vadd.f32 %v1725, %v1730
    %v1732 = vadd.f32 %v1726, %v1730
    %s1733 = scalar_lea.vmem %s6, 32
    %v1734 = vld [vmem:[%s1733] sm:$0xff]
    %v1735 = vld [vmem:[%s1733 + $0x8] sm:$0xff]
    %v1736 = vld [vmem:[%s1733 + $0x10] sm:$0xff]
    %v1737 = vld [vmem:[%s1733 + $0x18] sm:$0xff]
    %v1738 = vld [vmem:[#allocation2 + $0xf] sm:$0x1]
    %v1739 = vlaneseq
    %v1740 = vshrl.u32 %v1739, 7
    %v1741 = vsub.s32 0, %v1740
    %v1742 = vrot.slane %v1738, %v1741
    %v1744 = vsel %vm160, %v1731, 0
    %v1747 = vsel %vm160, %v1732, 0
    %1749 = vmatprep.subr.mxu0 0.0
    %1750 = vmatpush1.msra.mxu0 %v1734
    %1751 = vmatprep.subr.mxu0 0.0
    %1752 = vmatpush1.msra.mxu0 %v1735
    %1753 = vmatprep.subr.mxu0 0.0
    %1754 = vmatpush1.msra.mxu0 %v1736
    %1755 = vmatprep.subr.mxu0 0.0
    %1756 = vmatpush1.msra.mxu0 %v1737
    %1757 = vmatprep.subr.mxu0 0.0
    %1758 = vmatpush1.msra.mxu0 0.0
    %1759 = vmatprep.subr.mxu0 0.0
    %1760 = vmatpush1.msra.mxu0 0.0
    %1761 = vmatprep.subr.mxu0 0.0
    %1762 = vmatpush1.msra.mxu0 0.0
    %1763 = vmatprep.subr.mxu0 0.0
    %1764 = vmatpush1.msra.mxu0 0.0
    %1765 = vmatprep.subr.mxu0 0.0
    %1766 = vmatpush1.msra.mxu0 0.0
    %1767 = vmatprep.subr.mxu0 0.0
    %1768 = vmatpush1.msra.mxu0 0.0
    %1769 = vmatprep.subr.mxu0 0.0
    %1770 = vmatpush1.msra.mxu0 0.0
    %1771 = vmatprep.subr.mxu0 0.0
    %1772 = vmatpush1.msra.mxu0 0.0
    %1773 = vmatprep.subr.mxu0 0.0
    %1774 = vmatpush1.msra.mxu0 0.0
    %1775 = vmatprep.subr.mxu0 0.0
    %1776 = vmatpush1.msra.mxu0 0.0
    %1777 = vmatprep.subr.mxu0 0.0
    %1778 = vmatpush1.msra.mxu0 0.0
    %1779 = vmatprep.subr.mxu0 0.0
    %1780 = vmatpush1.msra.mxu0 0.0
    %1781 = vmatprep.subr.mxu0 0.0
    %1782 = vmatpush1.msra.mxu0 0.0
    %1783 = vmatprep.subr.mxu0 0.0
    %1784 = vmatpush1.msra.mxu0 0.0
    %1785 = vmatprep.subr.mxu0 0.0
    %1786 = vmatpush1.msra.mxu0 0.0
    %1787 = vmatprep.subr.mxu0 0.0
    %1788 = vmatpush1.msra.mxu0 0.0
    %1789 = vmatprep.subr.mxu0 0.0
    %1790 = vmatpush1.msra.mxu0 0.0
    %1791 = vmatprep.subr.mxu0 0.0
    %1792 = vmatpush1.msra.mxu0 0.0
    %1793 = vmatprep.subr.mxu0 0.0
    %1794 = vmatpush1.msra.mxu0 0.0
    %1795 = vmatprep.subr.mxu0 0.0
    %1796 = vmatpush1.msra.mxu0 0.0
    %1797 = vmatprep.subr.mxu0 0.0
    %1798 = vmatpush1.msra.mxu0 0.0
    %1799 = vmatprep.subr.mxu0 0.0
    %1800 = vmatpush1.msra.mxu0 0.0
    %1801 = vmatprep.subr.mxu0 0.0
    %1802 = vmatpush1.msra.mxu0 0.0
    %1803 = vmatprep.subr.mxu0 0.0
    %1804 = vmatpush1.msra.mxu0 0.0
    %1805 = vmatprep.subr.mxu0 0.0
    %1806 = vmatpush1.msra.mxu0 0.0
    %1807 = vmatprep.subr.mxu0 0.0
    %1808 = vmatpush1.msra.mxu0 0.0
    %1809 = vmatprep.subr.mxu0 0.0
    %1810 = vmatpush1.msra.mxu0 0.0
    %1811 = vmatprep.subr.mxu0 0.0
    %1812 = vmatpush1.msra.mxu0 0.0
    %1813 = vmatprep.mubr.f32.mxu0 0.0
    %1814 = vmatmul.mubr.f32.gmra.mrb[0].mxu0 %v1744
    %v1815 = vpop.f32.mrb[0].mxu0
    %v1816 = vadd.f32 %v1742, %v1815
    %v1817 = vpop.f32.mrb[0].mxu0
    %1818 = vmatprep.mubr.f32.mxu0 0.0
    %1819 = vmatmul.mubr.f32.gmra.mrb[0].mxu0 %v1747
    %v1820 = vpop.f32.mrb[0].mxu0
    %v1821 = vadd.f32 %v1742, %v1820
    %v1822 = vpop.f32.mrb[0].mxu0
    %1823 = vdwg.mxu0
    %v1824 = vmul.f32 %v1816, %v1816
    %v1825 = vmul.f32 %v1821, %v1821
    %v1826 = vmul.f32 %v1816, %v1824
    %v1827 = vmul.f32 %v1821, %v1825
    %v1828 = vmul.f32 %v1826, 0.044715
    %v1829 = vmul.f32 %v1827, 0.044715
    %v1830 = vadd.f32 %v1816, %v1828
    %v1831 = vadd.f32 %v1821, %v1829
    %v1832 = vmul.f32 %v1830, 0.7978846
    %v1833 = vmul.f32 %v1831, 0.7978846
    %v1834 = vtanh.pop %v1832
    %v1835 = vtanh.pop %v1833
    %v1836 = vadd.f32 %v1834, 1.0
    %v1837 = vadd.f32 %v1835, 1.0
    %v1838 = vmul.f32 %v1836, 0.5
    %v1839 = vmul.f32 %v1837, 0.5
    %v1840 = vmul.f32 %v1816, %v1838
    %v1841 = vmul.f32 %v1821, %v1839
    %s1842 = scalar_lea.vmem %s7, 64
    %v1843 = vld [vmem:[%s1842] sm:$0xff]
    %v1844 = vld [vmem:[%s1842 + $0x8] sm:$0xff]
    %v1845 = vld [vmem:[%s1842 + $0x10] sm:$0xff]
    %v1846 = vld [vmem:[%s1842 + $0x18] sm:$0xff]
    %v1847 = vld [vmem:[%s1842 + $0x20] sm:$0xff]
    %v1848 = vld [vmem:[%s1842 + $0x28] sm:$0xff]
    %v1849 = vld [vmem:[%s1842 + $0x30] sm:$0xff]
    %v1850 = vld [vmem:[%s1842 + $0x38] sm:$0xff]
    %v1851 = vld [vmem:[#allocation2 + $0x10] sm:$0x1]
    %v1852 = vlaneseq
    %v1853 = vshrl.u32 %v1852, 7
    %v1854 = vsub.s32 0, %v1853
    %v1855 = vrot.slane %v1851, %v1854
    %v1857 = vsel %vm73, %v1840, 0
    %v1860 = vsel %vm73, %v1841, 0
    %1862 = vmatprep.subr.mxu0 0.0
    %1863 = vmatpush1.msra.mxu0 %v1843
    %1864 = vmatprep.subr.mxu0 0.0
    %1865 = vmatpush1.msra.mxu0 %v1844
    %1866 = vmatprep.subr.mxu0 0.0
    %1867 = vmatpush1.msra.mxu0 %v1845
    %1868 = vmatprep.subr.mxu0 0.0
    %1869 = vmatpush1.msra.mxu0 %v1846
    %1870 = vmatprep.subr.mxu0 0.0
    %1871 = vmatpush1.msra.mxu0 %v1847
    %1872 = vmatprep.subr.mxu0 0.0
    %1873 = vmatpush1.msra.mxu0 %v1848
    %1874 = vmatprep.subr.mxu0 0.0
    %1875 = vmatpush1.msra.mxu0 %v1849
    %1876 = vmatprep.subr.mxu0 0.0
    %1877 = vmatpush1.msra.mxu0 %v1850
    %1878 = vmatprep.subr.mxu0 0.0
    %1879 = vmatpush1.msra.mxu0 0.0
    %1880 = vmatprep.subr.mxu0 0.0
    %1881 = vmatpush1.msra.mxu0 0.0
    %1882 = vmatprep.subr.mxu0 0.0
    %1883 = vmatpush1.msra.mxu0 0.0
    %1884 = vmatprep.subr.mxu0 0.0
    %1885 = vmatpush1.msra.mxu0 0.0
    %1886 = vmatprep.subr.mxu0 0.0
    %1887 = vmatpush1.msra.mxu0 0.0
    %1888 = vmatprep.subr.mxu0 0.0
    %1889 = vmatpush1.msra.mxu0 0.0
    %1890 = vmatprep.subr.mxu0 0.0
    %1891 = vmatpush1.msra.mxu0 0.0
    %1892 = vmatprep.subr.mxu0 0.0
    %1893 = vmatpush1.msra.mxu0 0.0
    %1894 = vmatprep.subr.mxu0 0.0
    %1895 = vmatpush1.msra.mxu0 0.0
    %1896 = vmatprep.subr.mxu0 0.0
    %1897 = vmatpush1.msra.mxu0 0.0
    %1898 = vmatprep.subr.mxu0 0.0
    %1899 = vmatpush1.msra.mxu0 0.0
    %1900 = vmatprep.subr.mxu0 0.0
    %1901 = vmatpush1.msra.mxu0 0.0
    %1902 = vmatprep.subr.mxu0 0.0
    %1903 = vmatpush1.msra.mxu0 0.0
    %1904 = vmatprep.subr.mxu0 0.0
    %1905 = vmatpush1.msra.mxu0 0.0
    %1906 = vmatprep.subr.mxu0 0.0
    %1907 = vmatpush1.msra.mxu0 0.0
    %1908 = vmatprep.subr.mxu0 0.0
    %1909 = vmatpush1.msra.mxu0 0.0
    %1910 = vmatprep.subr.mxu0 0.0
    %1911 = vmatpush1.msra.mxu0 0.0
    %1912 = vmatprep.subr.mxu0 0.0
    %1913 = vmatpush1.msra.mxu0 0.0
    %1914 = vmatprep.subr.mxu0 0.0
    %1915 = vmatpush1.msra.mxu0 0.0
    %1916 = vmatprep.subr.mxu0 0.0
    %1917 = vmatpush1.msra.mxu0 0.0
    %1918 = vmatprep.subr.mxu0 0.0
    %1919 = vmatpush1.msra.mxu0 0.0
    %1920 = vmatprep.subr.mxu0 0.0
    %1921 = vmatpush1.msra.mxu0 0.0
    %1922 = vmatprep.subr.mxu0 0.0
    %1923 = vmatpush1.msra.mxu0 0.0
    %1924 = vmatprep.subr.mxu0 0.0
    %1925 = vmatpush1.msra.mxu0 0.0
    %1926 = vmatprep.mubr.f32.mxu0 0.0
    %1927 = vmatmul.mubr.f32.gmra.mrb[0].mxu0 %v1857
    %v1928 = vpop.f32.mrb[0].mxu0
    %v1929 = vadd.f32 %v1855, %v1928
    %v1930 = vpop.f32.mrb[0].mxu0
    %1931 = vmatprep.mubr.f32.mxu0 0.0
    %1932 = vmatmul.mubr.f32.gmra.mrb[0].mxu0 %v1860
    %v1933 = vpop.f32.mrb[0].mxu0
    %v1934 = vadd.f32 %v1855, %v1933
    %v1935 = vpop.f32.mrb[0].mxu0
    %1936 = vdwg.mxu0
    %v1937 = vadd.f32 %v1731, %v1929
    %v1938 = vadd.f32 %v1732, %v1934
    %v1939 = vld [vmem:[#allocation2 + $0x11] sm:$0x1]
    %v1940 = vld [vmem:[#allocation2 + $0x12] sm:$0x1]
    %v1941 = vsel %vm160, %v1937, 0.0
    %1942 = vadd.xlane.f32.xlu0 %v1941
    %v1943 = vpop.xlane.xlu0 %1942
    %v1944 = vsel %vm160, %v1938, 0.0
    %1945 = vadd.xlane.f32.xlu0 %v1944
    %v1946 = vpop.xlane.xlu0 %1945
    %v1947 = vmul.f32 %v1943, %v167
    %v1948 = vmul.f32 %v1946, %v167
    %v1949 = vsub.f32 %v1937, %v1947
    %v1950 = vsub.f32 %v1938, %v1948
    %v1951 = vmul.f32 %v1949, %v1949
    %v1952 = vmul.f32 %v1950, %v1950
    %v1953 = vsel %vm160, %v1951, 0.0
    %1954 = vadd.xlane.f32.xlu0 %v1953
    %v1955 = vpop.xlane.xlu0 %1954
    %v1956 = vsel %vm160, %v1952, 0.0
    %1957 = vadd.xlane.f32.xlu0 %v1956
    %v1958 = vpop.xlane.xlu0 %1957
    %v1959 = vmul.f32 %v1955, %v167
    %v1960 = vmul.f32 %v1958, %v167
    %v1961 = vadd.f32 %v1959, 1e-12
    %v1962 = vadd.f32 %v1960, 1e-12
    %v1963 = vrsqrt.pop %v1961
    %v1964 = vrsqrt.pop %v1962
    %v1965 = vmul.f32 %v1949, %v1963
    %v1966 = vmul.f32 %v1950, %v1964
    %v1967 = vlaneseq
    %v1968 = vshrl.u32 %v1967, 7
    %v1969 = vsub.s32 0, %v1968
    %v1970 = vrot.slane %v1939, %v1969
    %v1971 = vmul.f32 %v1965, %v1970
    %v1972 = vmul.f32 %v1966, %v1970
    %v1973 = vlaneseq
    %v1974 = vshrl.u32 %v1973, 7
    %v1975 = vsub.s32 0, %v1974
    %v1976 = vrot.slane %v1940, %v1975
    %v1977 = vadd.f32 %v1971, %v1976
    %v1978 = vadd.f32 %v1972, %v1976
    %v1979 = vld [vmem:[%s8] sm:$0xff]
    %v1980 = vld [vmem:[%s8 + $0x8] sm:$0xff]
    %v1981 = vld [vmem:[%s8 + $0x10] sm:$0xff]
    %v1982 = vld [vmem:[%s8 + $0x18] sm:$0xff]
    %v1983 = vld [vmem:[#allocation2 + $0x2] sm:$0x1]
    %v1984 = vlaneseq
    %v1985 = vshrl.u32 %v1984, 7
    %v1986 = vsub.s32 0, %v1985
    %v1987 = vrot.slane %v1983, %v1986
    %v1989 = vsel %vm160, %v1977, 0
    %v1992 = vsel %vm160, %v1978, 0
    %1994 = vmatprep.subr.mxu0 0.0
    %1995 = vmatpush1.msra.mxu0 %v1979
    %1996 = vmatprep.subr.mxu0 0.0
    %1997 = vmatpush1.msra.mxu0 %v1980
    %1998 = vmatprep.subr.mxu0 0.0
    %1999 = vmatpush1.msra.mxu0 %v1981
    %2000 = vmatprep.subr.mxu0 0.0
    %2001 = vmatpush1.msra.mxu0 %v1982
    %2002 = vmatprep.subr.mxu0 0.0
    %2003 = vmatpush1.msra.mxu0 0.0
    %2004 = vmatprep.subr.mxu0 0.0
    %2005 = vmatpush1.msra.mxu0 0.0
    %2006 = vmatprep.subr.mxu0 0.0
    %2007 = vmatpush1.msra.mxu0 0.0
    %2008 = vmatprep.subr.mxu0 0.0
    %2009 = vmatpush1.msra.mxu0 0.0
    %2010 = vmatprep.subr.mxu0 0.0
    %2011 = vmatpush1.msra.mxu0 0.0
    %2012 = vmatprep.subr.mxu0 0.0
    %2013 = vmatpush1.msra.mxu0 0.0
    %2014 = vmatprep.subr.mxu0 0.0
    %2015 = vmatpush1.msra.mxu0 0.0
    %2016 = vmatprep.subr.mxu0 0.0
    %2017 = vmatpush1.msra.mxu0 0.0
    %2018 = vmatprep.subr.mxu0 0.0
    %2019 = vmatpush1.msra.mxu0 0.0
    %2020 = vmatprep.subr.mxu0 0.0
    %2021 = vmatpush1.msra.mxu0 0.0
    %2022 = vmatprep.subr.mxu0 0.0
    %2023 = vmatpush1.msra.mxu0 0.0
    %2024 = vmatprep.subr.mxu0 0.0
    %2025 = vmatpush1.msra.mxu0 0.0
    %2026 = vmatprep.subr.mxu0 0.0
    %2027 = vmatpush1.msra.mxu0 0.0
    %2028 = vmatprep.subr.mxu0 0.0
    %2029 = vmatpush1.msra.mxu0 0.0
    %2030 = vmatprep.subr.mxu0 0.0
    %2031 = vmatpush1.msra.mxu0 0.0
    %2032 = vmatprep.subr.mxu0 0.0
    %2033 = vmatpush1.msra.mxu0 0.0
    %2034 = vmatprep.subr.mxu0 0.0
    %2035 = vmatpush1.msra.mxu0 0.0
    %2036 = vmatprep.subr.mxu0 0.0
    %2037 = vmatpush1.msra.mxu0 0.0
    %2038 = vmatprep.subr.mxu0 0.0
    %2039 = vmatpush1.msra.mxu0 0.0
    %2040 = vmatprep.subr.mxu0 0.0
    %2041 = vmatpush1.msra.mxu0 0.0
    %2042 = vmatprep.subr.mxu0 0.0
    %2043 = vmatpush1.msra.mxu0 0.0
    %2044 = vmatprep.subr.mxu0 0.0
    %2045 = vmatpush1.msra.mxu0 0.0
    %2046 = vmatprep.subr.mxu0 0.0
    %2047 = vmatpush1.msra.mxu0 0.0
    %2048 = vmatprep.subr.mxu0 0.0
    %2049 = vmatpush1.msra.mxu0 0.0
    %2050 = vmatprep.subr.mxu0 0.0
    %2051 = vmatpush1.msra.mxu0 0.0
    %2052 = vmatprep.subr.mxu0 0.0
    %2053 = vmatpush1.msra.mxu0 0.0
    %2054 = vmatprep.subr.mxu0 0.0
    %2055 = vmatpush1.msra.mxu0 0.0
    %2056 = vmatprep.subr.mxu0 0.0
    %2057 = vmatpush1.msra.mxu0 0.0
    %2058 = vmatprep.mubr.f32.mxu0 0.0
    %2059 = vmatmul.mubr.f32.gmra.mrb[0].mxu0 %v1989
    %v2060 = vpop.f32.mrb[0].mxu0
    %v2061 = vadd.f32 %v1987, %v2060
    %v2062 = vpop.f32.mrb[0].mxu0
    %2063 = vmatprep.mubr.f32.mxu0 0.0
    %2064 = vmatmul.mubr.f32.gmra.mrb[0].mxu0 %v1992
    %v2065 = vpop.f32.mrb[0].mxu0
    %v2066 = vadd.f32 %v1987, %v2065
    %v2067 = vpop.f32.mrb[0].mxu0
    %2068 = vdwg.mxu0
    %2069 = vst [vmem:[%s10] sm:$0xff] %v2061
    %2070 = vst [vmem:[%s10 + $0x8] sm:$0xff] %v2066
    // Predicated region
    $region46: #{multi_task_forward.1} parent=1 // pred_check
      _
    $region47: #{multi_task_forward.1} parent=1 // pred_check_branch
      %2072 = sbr.rel (0) target = $region49
    $region48: #{multi_task_forward.1} parent=1 // pred_region
      _
    $region49: #{multi_task_forward.1} parent=1 // pred_fallthru
      _
    // Predicated region
    $region50: #{multi_task_forward.1} parent=1 // pred_check
      _
    $region51: #{multi_task_forward.1} parent=1 // pred_check_branch
      %2074 = sbr.rel (0) target = $region53
    $region52: #{multi_task_forward.1} parent=1 // pred_region
      _
    $region53: #{multi_task_forward.1} parent=1 // pred_fallthru
      _
    %2075 = vsyncpa [#allocation3], 1

</llo_original>
